<compile_context>
chip_gen: v6e
topology: v6e:2x2x1
jax: 0.10.0
libtpu: 0.0.40
codegen_flags: <defaults>
</compile_context>

<pallas_src>
import numpy as np
import jax
import jax.numpy as jnp
from jax import lax
from jax.experimental import pallas as pl
from jax.experimental.pallas import tpu as pltpu

_EPS = 1e-5
_RES_SCALE = 0.1
# 3x3 tap offsets in row-major tap order, j = (dh+1)*3 + (dw+1).
_OFFSETS = tuple((dh, dw) for dh in (-1, 0, 1) for dw in (-1, 0, 1))
_CENTER = 4  # offset (0, 0)


def _make_resblock_kernel(H, W, nb, eps=_EPS, res_scale=_RES_SCALE):
    HW = H * W

    def kernel(x_ref, mask_ref, w1_ref, w2_ref, o_ref, stk_ref):
        # x_ref   : (nb, Cp, HW)   images, lane-dense (HW on lanes)
        # mask_ref: (9, 1, HW)     grid-invariant zero-padding border masks
        # w*_ref  : (Cp, 9*Cp)     conv taps, [o, j*Cp + i]
        # o_ref   : (nb, Cp, HW)
        # stk_ref : (9*Cp, HW)     VMEM scratch for the stacked shifted slabs
        Cp = o_ref.shape[1]

        # Hoist grid-invariant masks and weights out of all loops (no per-tap reloads).
        mask_vals = [None if j == _CENTER else mask_ref[j] for j in range(9)]
        w1 = w1_ref[...]
        w2 = w2_ref[...]

        def conv3x3_instnorm(inp, w_flat):
            """3x3 'same' conv (zero padding) + InstanceNorm on a (Cp, HW) slab."""
            # Build the stacked (9*Cp, HW) operand: shifted, border-masked copies of inp.
            for j, (dh, dw) in enumerate(_OFFSETS):
                s = dh * W + dw
                if s == 0:
                    slab = inp                              # center tap: mask == 1
                else:
                    # rolled[c, p] == inp[c, (p + s) mod HW]; border mask zeroes the
                    # positions whose 3x3 neighbour falls outside the image (this IS
                    # the zero padding, and it also kills the roll wrap-around).
                    rolled = pltpu.roll(inp, shift=(-s) % HW, axis=1)
                    slab = rolled * mask_vals[j]
                stk_ref[j * Cp:(j + 1) * Cp, :] = slab.astype(stk_ref.dtype)
            # ONE MXU contraction, K = 9*Cp, f32 accumulation.
            acc = jnp.dot(w_flat, stk_ref[...], preferred_element_type=jnp.float32)
            # InstanceNorm2d (affine=False): biased variance over H*W, two-pass, f32.
            m = jnp.mean(acc, axis=1, keepdims=True)
            d = acc - m
            v = jnp.mean(d * d, axis=1, keepdims=True)
            return d * lax.rsqrt(v + eps)

        for b in range(nb):                                  # images in this grid step
            xb = x_ref[b].astype(jnp.float32)                # (Cp, HW)
            h = jnp.maximum(conv3x3_instnorm(xb, w1), 0.0)   # Conv2dBlock #1 (relu)
            r = conv3x3_instnorm(h, w2)                      # Conv2dBlock #2 (no act)
            o_ref[b] = (xb + res_scale * r).astype(o_ref.dtype)

    return kernel


def _border_masks(H, W):
    """Host-side constant (9, 1, H*W) f32 masks: 1 where the 3x3 neighbour is in-bounds."""
    HW = H * W
    rows = np.arange(HW, dtype=np.int32) // W
    cols = np.arange(HW, dtype=np.int32) % W
    masks = []
    for dh, dw in _OFFSETS:
        valid = ((rows + dh >= 0) & (rows + dh < H) &
                 (cols + dw >= 0) & (cols + dw < W))
        masks.append(valid.astype(np.float32))
    return np.stack(masks)[:, None, :]


def _flatten_weights(w, C, C_pad, dtype):
    # w[o, i, kh, kw] -> w_flat[o, j*C_pad + i], j = kh*3 + kw, zero-padded channels.
    w9 = jnp.transpose(w.reshape(C, C, 9), (0, 2, 1))        # (o, j, i)
    w9 = jnp.pad(w9, ((0, C_pad - C), (0, 0), (0, C_pad - C)))
    return w9.reshape(C_pad, 9 * C_pad).astype(dtype)


def _pick_images_per_step(N, C_pad, HW, itemsize=4, budget_bytes=4 << 20):
    # Rough per-image VMEM working set: double-buffered image/out blocks + the
    # conv temporaries + the shared (9*Cp, HW) stacked scratch.
    per_img = (6 * C_pad * HW + 9 * C_pad * HW) * itemsize
    nb = int(max(1, min(N, budget_bytes // max(per_img, 1))))
    while N % nb:
        nb -= 1
    return nb


def resblock_forward(x, w1, b1, w2, b2, matmul_dtype=jnp.float32):
    """x: (N, C, H, W); w*: (C, C, 3, 3); b*: (C,).  Biases are mathematically
    cancelled by the non-affine InstanceNorm that immediately follows each conv."""
    del b1, b2
    N, C, H, W = x.shape
    HW = H * W
    C_pad = -(-C // 8) * 8                      # pad channels to the 8-sublane tile

    x3 = x.reshape(N, C, HW)
    if C_pad != C:
        x3 = jnp.pad(x3, ((0, 0), (0, C_pad - C), (0, 0)))
    masks = jnp.asarray(_border_masks(H, W))    # constant, hoisted out of the kernel
    w1f = _flatten_weights(w1, C, C_pad, matmul_dtype)
    w2f = _flatten_weights(w2, C, C_pad, matmul_dtype)

    nb = _pick_images_per_step(N, C_pad, HW)
    kernel = _make_resblock_kernel(H, W, nb)

    out3 = pl.pallas_call(
        kernel,
        out_shape=jax.ShapeDtypeStruct((N, C_pad, HW), x.dtype),
        grid_spec=pltpu.PrefetchScalarGridSpec(
            num_scalar_prefetch=0,
            grid=(N // nb,),
            in_specs=[
                pl.BlockSpec((nb, C_pad, HW), lambda n: (n, 0, 0)),   # images
                pl.BlockSpec((9, 1, HW), lambda n: (0, 0, 0)),        # border masks
                pl.BlockSpec((C_pad, 9 * C_pad), lambda n: (0, 0)),   # conv1 taps
                pl.BlockSpec((C_pad, 9 * C_pad), lambda n: (0, 0)),   # conv2 taps
            ],
            out_specs=pl.BlockSpec((nb, C_pad, HW), lambda n: (n, 0, 0)),
            scratch_shapes=[pltpu.VMEM((9 * C_pad, HW), matmul_dtype)],
        ),
        input_output_aliases={0: 0},            # reuse the image HBM buffer for out
        compiler_params=pltpu.CompilerParams(
            dimension_semantics=("parallel",),
            vmem_limit_bytes=32 * 1024 * 1024,
        ),
    )(x3, masks, w1f, w2f)

    return out3[:, :C, :].reshape(N, C, H, W)


def _ref_forward(x, w1, b1, w2, b2):
    """Pure-JAX reference mirroring the PyTorch module (biases included)."""
    def conv(x, w, b):
        y = lax.conv_general_dilated(
            x, w, window_strides=(1, 1), padding=((1, 1), (1, 1)),
            dimension_numbers=("NCHW", "OIHW", "NCHW"))
        return y + b[None, :, None, None]

    def inorm(y):
        m = jnp.mean(y, axis=(2, 3), keepdims=True)
        v = jnp.mean((y - m) ** 2, axis=(2, 3), keepdims=True)
        return (y - m) * lax.rsqrt(v + _EPS)

    h = jnp.maximum(inorm(conv(x, w1, b1)), 0.0)
    r = inorm(conv(h, w2, b2))
    return x + _RES_SCALE * r


if __name__ == "__main__":
    N, C, H, W = 2, 4, 16, 16
    key = jax.random.PRNGKey(0)
    kx, kw1, kb1, kw2, kb2 = jax.random.split(key, 5)

    fan_in = C * 3 * 3
    scale = (1.0 / fan_in) ** 0.5
    x = jax.random.normal(kx, (N, C, H, W), jnp.float32)
    w1 = jax.random.normal(kw1, (C, C, 3, 3), jnp.float32) * scale
    b1 = jax.random.normal(kb1, (C,), jnp.float32) * scale
    w2 = jax.random.normal(kw2, (C, C, 3, 3), jnp.float32) * scale
    b2 = jax.random.normal(kb2, (C,), jnp.float32) * scale

    out = jax.jit(resblock_forward)(x, w1, b1, w2, b2)
    out = jax.block_until_ready(out)

    ref = _ref_forward(x, w1, b1, w2, b2)
    assert out.shape == (N, C, H, W)
    err = float(jnp.max(jnp.abs(out - ref)))
    assert jnp.allclose(out, ref, atol=1e-4, rtol=1e-4), err
    print("KERNEL_OK")
</pallas_src>

<mosaic_0001>
module attributes {stable_mosaic.version = 11 : i64} {
  func.func @kernel(%arg0: i32, %arg1: memref<2x8x256xf32, #tpu.memory_space<vmem>>, %arg2: memref<9x1x256xf32, #tpu.memory_space<vmem>>, %arg3: memref<8x72xf32, #tpu.memory_space<vmem>>, %arg4: memref<8x72xf32, #tpu.memory_space<vmem>>, %arg5: memref<2x8x256xf32, #tpu.memory_space<vmem>>, %arg6: memref<72x256xf32, #tpu.memory_space<vmem>>) attributes {dimension_semantics = [#tpu.dimension_semantics<parallel>], iteration_bounds = array<i64: 1>, scalar_prefetch = 0 : i64, scratch_operands = 1 : i64, tpu.core_type = #tpu.core_type<tc>, window_params = [{transform_indices = @transform_0, window_bounds = array<i64: 2, 8, 256>}, {pipeline_mode = #tpu.pipeline_mode<synchronous>, transform_indices = @transform_1, window_bounds = array<i64: 9, 1, 256>}, {pipeline_mode = #tpu.pipeline_mode<synchronous>, transform_indices = @transform_2, window_bounds = array<i64: 8, 72>}, {pipeline_mode = #tpu.pipeline_mode<synchronous>, transform_indices = @transform_3, window_bounds = array<i64: 8, 72>}, {transform_indices = @transform_4, window_bounds = array<i64: 2, 8, 256>}]} {
    %c0 = arith.constant 0 : index
    %c0_0 = arith.constant 0 : index
    %c0_1 = arith.constant 0 : index
    %0 = vector.load %arg2[%c0, %c0_0, %c0_1] : memref<9x1x256xf32, #tpu.memory_space<vmem>>, vector<1x1x256xf32>
    %1 = vector.shape_cast %0 : vector<1x1x256xf32> to vector<1x256xf32>
    %c1 = arith.constant 1 : index
    %c0_2 = arith.constant 0 : index
    %c0_3 = arith.constant 0 : index
    %2 = vector.load %arg2[%c1, %c0_2, %c0_3] : memref<9x1x256xf32, #tpu.memory_space<vmem>>, vector<1x1x256xf32>
    %3 = vector.shape_cast %2 : vector<1x1x256xf32> to vector<1x256xf32>
    %c2 = arith.constant 2 : index
    %c0_4 = arith.constant 0 : index
    %c0_5 = arith.constant 0 : index
    %4 = vector.load %arg2[%c2, %c0_4, %c0_5] : memref<9x1x256xf32, #tpu.memory_space<vmem>>, vector<1x1x256xf32>
    %5 = vector.shape_cast %4 : vector<1x1x256xf32> to vector<1x256xf32>
    %c3 = arith.constant 3 : index
    %c0_6 = arith.constant 0 : index
    %c0_7 = arith.constant 0 : index
    %6 = vector.load %arg2[%c3, %c0_6, %c0_7] : memref<9x1x256xf32, #tpu.memory_space<vmem>>, vector<1x1x256xf32>
    %7 = vector.shape_cast %6 : vector<1x1x256xf32> to vector<1x256xf32>
    %c5 = arith.constant 5 : index
    %c0_8 = arith.constant 0 : index
    %c0_9 = arith.constant 0 : index
    %8 = vector.load %arg2[%c5, %c0_8, %c0_9] : memref<9x1x256xf32, #tpu.memory_space<vmem>>, vector<1x1x256xf32>
    %9 = vector.shape_cast %8 : vector<1x1x256xf32> to vector<1x256xf32>
    %c6 = arith.constant 6 : index
    %c0_10 = arith.constant 0 : index
    %c0_11 = arith.constant 0 : index
    %10 = vector.load %arg2[%c6, %c0_10, %c0_11] : memref<9x1x256xf32, #tpu.memory_space<vmem>>, vector<1x1x256xf32>
    %11 = vector.shape_cast %10 : vector<1x1x256xf32> to vector<1x256xf32>
    %c7 = arith.constant 7 : index
    %c0_12 = arith.constant 0 : index
    %c0_13 = arith.constant 0 : index
    %12 = vector.load %arg2[%c7, %c0_12, %c0_13] : memref<9x1x256xf32, #tpu.memory_space<vmem>>, vector<1x1x256xf32>
    %13 = vector.shape_cast %12 : vector<1x1x256xf32> to vector<1x256xf32>
    %c8 = arith.constant 8 : index
    %c0_14 = arith.constant 0 : index
    %c0_15 = arith.constant 0 : index
    %14 = vector.load %arg2[%c8, %c0_14, %c0_15] : memref<9x1x256xf32, #tpu.memory_space<vmem>>, vector<1x1x256xf32>
    %15 = vector.shape_cast %14 : vector<1x1x256xf32> to vector<1x256xf32>
    %c0_16 = arith.constant 0 : index
    %c0_17 = arith.constant 0 : index
    %16 = vector.load %arg3[%c0_16, %c0_17] : memref<8x72xf32, #tpu.memory_space<vmem>>, vector<8x72xf32>
    %c0_18 = arith.constant 0 : index
    %c0_19 = arith.constant 0 : index
    %17 = vector.load %arg4[%c0_18, %c0_19] : memref<8x72xf32, #tpu.memory_space<vmem>>, vector<8x72xf32>
    %c0_20 = arith.constant 0 : index
    %c0_21 = arith.constant 0 : index
    %c0_22 = arith.constant 0 : index
    %18 = vector.load %arg1[%c0_20, %c0_21, %c0_22] : memref<2x8x256xf32, #tpu.memory_space<vmem>>, vector<1x8x256xf32>
    %19 = vector.shape_cast %18 : vector<1x8x256xf32> to vector<8x256xf32>
    %c17_i32 = arith.constant 17 : i32
    %20 = tpu.dynamic_rotate %19 by %c17_i32 dim 1 : vector<8x256xf32>, i32 -> vector<8x256xf32>
    %21 = vector.broadcast %1 : vector<1x256xf32> to vector<8x256xf32>
    %22 = arith.mulf %20, %21 : vector<8x256xf32>
    %c0_23 = arith.constant 0 : index
    %c0_24 = arith.constant 0 : index
    %23 = vector.load %arg6[%c0_23, %c0_24] : memref<72x256xf32, #tpu.memory_space<vmem>>, vector<8x256xf32>
    tpu.vector_store %arg6[%c0_23, %c0_24], %22 {strides = array<i32>} : memref<72x256xf32, #tpu.memory_space<vmem>>, vector<8x256xf32>,
    %c16_i32 = arith.constant 16 : i32
    %24 = tpu.dynamic_rotate %19 by %c16_i32 dim 1 : vector<8x256xf32>, i32 -> vector<8x256xf32>
    %25 = vector.broadcast %3 : vector<1x256xf32> to vector<8x256xf32>
    %26 = arith.mulf %24, %25 : vector<8x256xf32>
    %c8_25 = arith.constant 8 : index
    %c0_26 = arith.constant 0 : index
    %27 = vector.load %arg6[%c8_25, %c0_26] : memref<72x256xf32, #tpu.memory_space<vmem>>, vector<8x256xf32>
    tpu.vector_store %arg6[%c8_25, %c0_26], %26 {strides = array<i32>} : memref<72x256xf32, #tpu.memory_space<vmem>>, vector<8x256xf32>,
    %c15_i32 = arith.constant 15 : i32
    %28 = tpu.dynamic_rotate %19 by %c15_i32 dim 1 : vector<8x256xf32>, i32 -> vector<8x256xf32>
    %29 = vector.broadcast %5 : vector<1x256xf32> to vector<8x256xf32>
    %30 = arith.mulf %28, %29 : vector<8x256xf32>
    %c16 = arith.constant 16 : index
    %c0_27 = arith.constant 0 : index
    %31 = vector.load %arg6[%c16, %c0_27] : memref<72x256xf32, #tpu.memory_space<vmem>>, vector<8x256xf32>
    tpu.vector_store %arg6[%c16, %c0_27], %30 {strides = array<i32>} : memref<72x256xf32, #tpu.memory_space<vmem>>, vector<8x256xf32>,
    %c1_i32 = arith.constant 1 : i32
    %32 = tpu.dynamic_rotate %19 by %c1_i32 dim 1 : vector<8x256xf32>, i32 -> vector<8x256xf32>
    %33 = vector.broadcast %7 : vector<1x256xf32> to vector<8x256xf32>
    %34 = arith.mulf %32, %33 : vector<8x256xf32>
    %c24 = arith.constant 24 : index
    %c0_28 = arith.constant 0 : index
    %35 = vector.load %arg6[%c24, %c0_28] : memref<72x256xf32, #tpu.memory_space<vmem>>, vector<8x256xf32>
    tpu.vector_store %arg6[%c24, %c0_28], %34 {strides = array<i32>} : memref<72x256xf32, #tpu.memory_space<vmem>>, vector<8x256xf32>,
    %c32 = arith.constant 32 : index
    %c0_29 = arith.constant 0 : index
    %36 = vector.load %arg6[%c32, %c0_29] : memref<72x256xf32, #tpu.memory_space<vmem>>, vector<8x256xf32>
    tpu.vector_store %arg6[%c32, %c0_29], %19 {strides = array<i32>} : memref<72x256xf32, #tpu.memory_space<vmem>>, vector<8x256xf32>,
    %c255_i32 = arith.constant 255 : i32
    %37 = tpu.dynamic_rotate %19 by %c255_i32 dim 1 : vector<8x256xf32>, i32 -> vector<8x256xf32>
    %38 = vector.broadcast %9 : vector<1x256xf32> to vector<8x256xf32>
    %39 = arith.mulf %37, %38 : vector<8x256xf32>
    %c40 = arith.constant 40 : index
    %c0_30 = arith.constant 0 : index
    %40 = vector.load %arg6[%c40, %c0_30] : memref<72x256xf32, #tpu.memory_space<vmem>>, vector<8x256xf32>
    tpu.vector_store %arg6[%c40, %c0_30], %39 {strides = array<i32>} : memref<72x256xf32, #tpu.memory_space<vmem>>, vector<8x256xf32>,
    %c241_i32 = arith.constant 241 : i32
    %41 = tpu.dynamic_rotate %19 by %c241_i32 dim 1 : vector<8x256xf32>, i32 -> vector<8x256xf32>
    %42 = vector.broadcast %11 : vector<1x256xf32> to vector<8x256xf32>
    %43 = arith.mulf %41, %42 : vector<8x256xf32>
    %c48 = arith.constant 48 : index
    %c0_31 = arith.constant 0 : index
    %44 = vector.load %arg6[%c48, %c0_31] : memref<72x256xf32, #tpu.memory_space<vmem>>, vector<8x256xf32>
    tpu.vector_store %arg6[%c48, %c0_31], %43 {strides = array<i32>} : memref<72x256xf32, #tpu.memory_space<vmem>>, vector<8x256xf32>,
    %c240_i32 = arith.constant 240 : i32
    %45 = tpu.dynamic_rotate %19 by %c240_i32 dim 1 : vector<8x256xf32>, i32 -> vector<8x256xf32>
    %46 = vector.broadcast %13 : vector<1x256xf32> to vector<8x256xf32>
    %47 = arith.mulf %45, %46 : vector<8x256xf32>
    %c56 = arith.constant 56 : index
    %c0_32 = arith.constant 0 : index
    %48 = vector.load %arg6[%c56, %c0_32] : memref<72x256xf32, #tpu.memory_space<vmem>>, vector<8x256xf32>
    tpu.vector_store %arg6[%c56, %c0_32], %47 {strides = array<i32>} : memref<72x256xf32, #tpu.memory_space<vmem>>, vector<8x256xf32>,
    %c239_i32 = arith.constant 239 : i32
    %49 = tpu.dynamic_rotate %19 by %c239_i32 dim 1 : vector<8x256xf32>, i32 -> vector<8x256xf32>
    %50 = vector.broadcast %15 : vector<1x256xf32> to vector<8x256xf32>
    %51 = arith.mulf %49, %50 : vector<8x256xf32>
    %c64 = arith.constant 64 : index
    %c0_33 = arith.constant 0 : index
    %52 = vector.load %arg6[%c64, %c0_33] : memref<72x256xf32, #tpu.memory_space<vmem>>, vector<8x256xf32>
    tpu.vector_store %arg6[%c64, %c0_33], %51 {strides = array<i32>} : memref<72x256xf32, #tpu.memory_space<vmem>>, vector<8x256xf32>,
    %c0_34 = arith.constant 0 : index
    %c0_35 = arith.constant 0 : index
    %53 = vector.load %arg6[%c0_34, %c0_35] : memref<72x256xf32, #tpu.memory_space<vmem>>, vector<72x256xf32>
    %cst = arith.constant dense<0.000000e+00> : vector<8x256xf32>
    %54 = tpu.matmul %16, %53, %cst {dimension_numbers = #tpu.dot_dimension_numbers<[1], [0], [0], [1], [0, 0, 1, 1], [], []>} : vector<8x72xf32>, vector<72x256xf32>, vector<8x256xf32> -> vector<8x256xf32>
    %cst_36 = arith.constant dense<0.000000e+00> : vector<8xf32>
    %55 = vector.multi_reduction <add>, %54, %cst_36 [1] : vector<8x256xf32> to vector<8xf32>
    %56 = vector.shape_cast %55 : vector<8xf32> to vector<8x1xf32>
    %cst_37 = arith.constant 2.560000e+02 : f32
    %57 = vector.broadcast %cst_37 : f32 to vector<8x1xf32>
    %58 = arith.divf %56, %57 : vector<8x1xf32>
    %59 = vector.broadcast %58 : vector<8x1xf32> to vector<8x256xf32>
    %60 = arith.subf %54, %59 : vector<8x256xf32>
    %61 = arith.mulf %60, %60 : vector<8x256xf32>
    %cst_38 = arith.constant dense<0.000000e+00> : vector<8xf32>
    %62 = vector.multi_reduction <add>, %61, %cst_38 [1] : vector<8x256xf32> to vector<8xf32>
    %63 = vector.shape_cast %62 : vector<8xf32> to vector<8x1xf32>
    %cst_39 = arith.constant 2.560000e+02 : f32
    %64 = vector.broadcast %cst_39 : f32 to vector<8x1xf32>
    %65 = arith.divf %63, %64 : vector<8x1xf32>
    %cst_40 = arith.constant 9.99999974E-6 : f32
    %66 = vector.broadcast %cst_40 : f32 to vector<8x1xf32>
    %67 = arith.addf %65, %66 : vector<8x1xf32>
    %68 = math.rsqrt %67 : vector<8x1xf32>
    %69 = vector.broadcast %68 : vector<8x1xf32> to vector<8x256xf32>
    %70 = arith.mulf %60, %69 : vector<8x256xf32>
    %cst_41 = arith.constant 0.000000e+00 : f32
    %71 = vector.broadcast %cst_41 : f32 to vector<8x256xf32>
    %72 = arith.maximumf %70, %71 : vector<8x256xf32>
    %c17_i32_42 = arith.constant 17 : i32
    %73 = tpu.dynamic_rotate %72 by %c17_i32_42 dim 1 : vector<8x256xf32>, i32 -> vector<8x256xf32>
    %74 = vector.broadcast %1 : vector<1x256xf32> to vector<8x256xf32>
    %75 = arith.mulf %73, %74 : vector<8x256xf32>
    %c0_43 = arith.constant 0 : index
    %c0_44 = arith.constant 0 : index
    %76 = vector.load %arg6[%c0_43, %c0_44] : memref<72x256xf32, #tpu.memory_space<vmem>>, vector<8x256xf32>
    tpu.vector_store %arg6[%c0_43, %c0_44], %75 {strides = array<i32>} : memref<72x256xf32, #tpu.memory_space<vmem>>, vector<8x256xf32>,
    %c16_i32_45 = arith.constant 16 : i32
    %77 = tpu.dynamic_rotate %72 by %c16_i32_45 dim 1 : vector<8x256xf32>, i32 -> vector<8x256xf32>
    %78 = vector.broadcast %3 : vector<1x256xf32> to vector<8x256xf32>
    %79 = arith.mulf %77, %78 : vector<8x256xf32>
    %c8_46 = arith.constant 8 : index
    %c0_47 = arith.constant 0 : index
    %80 = vector.load %arg6[%c8_46, %c0_47] : memref<72x256xf32, #tpu.memory_space<vmem>>, vector<8x256xf32>
    tpu.vector_store %arg6[%c8_46, %c0_47], %79 {strides = array<i32>} : memref<72x256xf32, #tpu.memory_space<vmem>>, vector<8x256xf32>,
    %c15_i32_48 = arith.constant 15 : i32
    %81 = tpu.dynamic_rotate %72 by %c15_i32_48 dim 1 : vector<8x256xf32>, i32 -> vector<8x256xf32>
    %82 = vector.broadcast %5 : vector<1x256xf32> to vector<8x256xf32>
    %83 = arith.mulf %81, %82 : vector<8x256xf32>
    %c16_49 = arith.constant 16 : index
    %c0_50 = arith.constant 0 : index
    %84 = vector.load %arg6[%c16_49, %c0_50] : memref<72x256xf32, #tpu.memory_space<vmem>>, vector<8x256xf32>
    tpu.vector_store %arg6[%c16_49, %c0_50], %83 {strides = array<i32>} : memref<72x256xf32, #tpu.memory_space<vmem>>, vector<8x256xf32>,
    %c1_i32_51 = arith.constant 1 : i32
    %85 = tpu.dynamic_rotate %72 by %c1_i32_51 dim 1 : vector<8x256xf32>, i32 -> vector<8x256xf32>
    %86 = vector.broadcast %7 : vector<1x256xf32> to vector<8x256xf32>
    %87 = arith.mulf %85, %86 : vector<8x256xf32>
    %c24_52 = arith.constant 24 : index
    %c0_53 = arith.constant 0 : index
    %88 = vector.load %arg6[%c24_52, %c0_53] : memref<72x256xf32, #tpu.memory_space<vmem>>, vector<8x256xf32>
    tpu.vector_store %arg6[%c24_52, %c0_53], %87 {strides = array<i32>} : memref<72x256xf32, #tpu.memory_space<vmem>>, vector<8x256xf32>,
    %c32_54 = arith.constant 32 : index
    %c0_55 = arith.constant 0 : index
    %89 = vector.load %arg6[%c32_54, %c0_55] : memref<72x256xf32, #tpu.memory_space<vmem>>, vector<8x256xf32>
    tpu.vector_store %arg6[%c32_54, %c0_55], %72 {strides = array<i32>} : memref<72x256xf32, #tpu.memory_space<vmem>>, vector<8x256xf32>,
    %c255_i32_56 = arith.constant 255 : i32
    %90 = tpu.dynamic_rotate %72 by %c255_i32_56 dim 1 : vector<8x256xf32>, i32 -> vector<8x256xf32>
    %91 = vector.broadcast %9 : vector<1x256xf32> to vector<8x256xf32>
    %92 = arith.mulf %90, %91 : vector<8x256xf32>
    %c40_57 = arith.constant 40 : index
    %c0_58 = arith.constant 0 : index
    %93 = vector.load %arg6[%c40_57, %c0_58] : memref<72x256xf32, #tpu.memory_space<vmem>>, vector<8x256xf32>
    tpu.vector_store %arg6[%c40_57, %c0_58], %92 {strides = array<i32>} : memref<72x256xf32, #tpu.memory_space<vmem>>, vector<8x256xf32>,
    %c241_i32_59 = arith.constant 241 : i32
    %94 = tpu.dynamic_rotate %72 by %c241_i32_59 dim 1 : vector<8x256xf32>, i32 -> vector<8x256xf32>
    %95 = vector.broadcast %11 : vector<1x256xf32> to vector<8x256xf32>
    %96 = arith.mulf %94, %95 : vector<8x256xf32>
    %c48_60 = arith.constant 48 : index
    %c0_61 = arith.constant 0 : index
    %97 = vector.load %arg6[%c48_60, %c0_61] : memref<72x256xf32, #tpu.memory_space<vmem>>, vector<8x256xf32>
    tpu.vector_store %arg6[%c48_60, %c0_61], %96 {strides = array<i32>} : memref<72x256xf32, #tpu.memory_space<vmem>>, vector<8x256xf32>,
    %c240_i32_62 = arith.constant 240 : i32
    %98 = tpu.dynamic_rotate %72 by %c240_i32_62 dim 1 : vector<8x256xf32>, i32 -> vector<8x256xf32>
    %99 = vector.broadcast %13 : vector<1x256xf32> to vector<8x256xf32>
    %100 = arith.mulf %98, %99 : vector<8x256xf32>
    %c56_63 = arith.constant 56 : index
    %c0_64 = arith.constant 0 : index
    %101 = vector.load %arg6[%c56_63, %c0_64] : memref<72x256xf32, #tpu.memory_space<vmem>>, vector<8x256xf32>
    tpu.vector_store %arg6[%c56_63, %c0_64], %100 {strides = array<i32>} : memref<72x256xf32, #tpu.memory_space<vmem>>, vector<8x256xf32>,
    %c239_i32_65 = arith.constant 239 : i32
    %102 = tpu.dynamic_rotate %72 by %c239_i32_65 dim 1 : vector<8x256xf32>, i32 -> vector<8x256xf32>
    %103 = vector.broadcast %15 : vector<1x256xf32> to vector<8x256xf32>
    %104 = arith.mulf %102, %103 : vector<8x256xf32>
    %c64_66 = arith.constant 64 : index
    %c0_67 = arith.constant 0 : index
    %105 = vector.load %arg6[%c64_66, %c0_67] : memref<72x256xf32, #tpu.memory_space<vmem>>, vector<8x256xf32>
    tpu.vector_store %arg6[%c64_66, %c0_67], %104 {strides = array<i32>} : memref<72x256xf32, #tpu.memory_space<vmem>>, vector<8x256xf32>,
    %c0_68 = arith.constant 0 : index
    %c0_69 = arith.constant 0 : index
    %106 = vector.load %arg6[%c0_68, %c0_69] : memref<72x256xf32, #tpu.memory_space<vmem>>, vector<72x256xf32>
    %cst_70 = arith.constant dense<0.000000e+00> : vector<8x256xf32>
    %107 = tpu.matmul %17, %106, %cst_70 {dimension_numbers = #tpu.dot_dimension_numbers<[1], [0], [0], [1], [0, 0, 1, 1], [], []>} : vector<8x72xf32>, vector<72x256xf32>, vector<8x256xf32> -> vector<8x256xf32>
    %cst_71 = arith.constant dense<0.000000e+00> : vector<8xf32>
    %108 = vector.multi_reduction <add>, %107, %cst_71 [1] : vector<8x256xf32> to vector<8xf32>
    %109 = vector.shape_cast %108 : vector<8xf32> to vector<8x1xf32>
    %cst_72 = arith.constant 2.560000e+02 : f32
    %110 = vector.broadcast %cst_72 : f32 to vector<8x1xf32>
    %111 = arith.divf %109, %110 : vector<8x1xf32>
    %112 = vector.broadcast %111 : vector<8x1xf32> to vector<8x256xf32>
    %113 = arith.subf %107, %112 : vector<8x256xf32>
    %114 = arith.mulf %113, %113 : vector<8x256xf32>
    %cst_73 = arith.constant dense<0.000000e+00> : vector<8xf32>
    %115 = vector.multi_reduction <add>, %114, %cst_73 [1] : vector<8x256xf32> to vector<8xf32>
    %116 = vector.shape_cast %115 : vector<8xf32> to vector<8x1xf32>
    %cst_74 = arith.constant 2.560000e+02 : f32
    %117 = vector.broadcast %cst_74 : f32 to vector<8x1xf32>
    %118 = arith.divf %116, %117 : vector<8x1xf32>
    %cst_75 = arith.constant 9.99999974E-6 : f32
    %119 = vector.broadcast %cst_75 : f32 to vector<8x1xf32>
    %120 = arith.addf %118, %119 : vector<8x1xf32>
    %121 = math.rsqrt %120 : vector<8x1xf32>
    %122 = vector.broadcast %121 : vector<8x1xf32> to vector<8x256xf32>
    %123 = arith.mulf %113, %122 : vector<8x256xf32>
    %cst_76 = arith.constant 1.000000e-01 : f32
    %124 = vector.broadcast %cst_76 : f32 to vector<8x256xf32>
    %125 = arith.mulf %124, %123 : vector<8x256xf32>
    %126 = arith.addf %19, %125 : vector<8x256xf32>
    %c0_77 = arith.constant 0 : index
    %c0_78 = arith.constant 0 : index
    %c0_79 = arith.constant 0 : index
    %127 = vector.load %arg5[%c0_77, %c0_78, %c0_79] : memref<2x8x256xf32, #tpu.memory_space<vmem>>, vector<1x8x256xf32>
    %128 = vector.shape_cast %127 : vector<1x8x256xf32> to vector<8x256xf32>
    %129 = vector.shape_cast %126 : vector<8x256xf32> to vector<1x8x256xf32>
    tpu.vector_store %arg5[%c0_77, %c0_78, %c0_79], %129 {strides = array<i32>} : memref<2x8x256xf32, #tpu.memory_space<vmem>>, vector<1x8x256xf32>,
    %c1_80 = arith.constant 1 : index
    %c0_81 = arith.constant 0 : index
    %c0_82 = arith.constant 0 : index
    %130 = vector.load %arg1[%c1_80, %c0_81, %c0_82] : memref<2x8x256xf32, #tpu.memory_space<vmem>>, vector<1x8x256xf32>
    %131 = vector.shape_cast %130 : vector<1x8x256xf32> to vector<8x256xf32>
    %c17_i32_83 = arith.constant 17 : i32
    %132 = tpu.dynamic_rotate %131 by %c17_i32_83 dim 1 : vector<8x256xf32>, i32 -> vector<8x256xf32>
    %133 = vector.broadcast %1 : vector<1x256xf32> to vector<8x256xf32>
    %134 = arith.mulf %132, %133 : vector<8x256xf32>
    %c0_84 = arith.constant 0 : index
    %c0_85 = arith.constant 0 : index
    %135 = vector.load %arg6[%c0_84, %c0_85] : memref<72x256xf32, #tpu.memory_space<vmem>>, vector<8x256xf32>
    tpu.vector_store %arg6[%c0_84, %c0_85], %134 {strides = array<i32>} : memref<72x256xf32, #tpu.memory_space<vmem>>, vector<8x256xf32>,
    %c16_i32_86 = arith.constant 16 : i32
    %136 = tpu.dynamic_rotate %131 by %c16_i32_86 dim 1 : vector<8x256xf32>, i32 -> vector<8x256xf32>
    %137 = vector.broadcast %3 : vector<1x256xf32> to vector<8x256xf32>
    %138 = arith.mulf %136, %137 : vector<8x256xf32>
    %c8_87 = arith.constant 8 : index
    %c0_88 = arith.constant 0 : index
    %139 = vector.load %arg6[%c8_87, %c0_88] : memref<72x256xf32, #tpu.memory_space<vmem>>, vector<8x256xf32>
    tpu.vector_store %arg6[%c8_87, %c0_88], %138 {strides = array<i32>} : memref<72x256xf32, #tpu.memory_space<vmem>>, vector<8x256xf32>,
    %c15_i32_89 = arith.constant 15 : i32
    %140 = tpu.dynamic_rotate %131 by %c15_i32_89 dim 1 : vector<8x256xf32>, i32 -> vector<8x256xf32>
    %141 = vector.broadcast %5 : vector<1x256xf32> to vector<8x256xf32>
    %142 = arith.mulf %140, %141 : vector<8x256xf32>
    %c16_90 = arith.constant 16 : index
    %c0_91 = arith.constant 0 : index
    %143 = vector.load %arg6[%c16_90, %c0_91] : memref<72x256xf32, #tpu.memory_space<vmem>>, vector<8x256xf32>
    tpu.vector_store %arg6[%c16_90, %c0_91], %142 {strides = array<i32>} : memref<72x256xf32, #tpu.memory_space<vmem>>, vector<8x256xf32>,
    %c1_i32_92 = arith.constant 1 : i32
    %144 = tpu.dynamic_rotate %131 by %c1_i32_92 dim 1 : vector<8x256xf32>, i32 -> vector<8x256xf32>
    %145 = vector.broadcast %7 : vector<1x256xf32> to vector<8x256xf32>
    %146 = arith.mulf %144, %145 : vector<8x256xf32>
    %c24_93 = arith.constant 24 : index
    %c0_94 = arith.constant 0 : index
    %147 = vector.load %arg6[%c24_93, %c0_94] : memref<72x256xf32, #tpu.memory_space<vmem>>, vector<8x256xf32>
    tpu.vector_store %arg6[%c24_93, %c0_94], %146 {strides = array<i32>} : memref<72x256xf32, #tpu.memory_space<vmem>>, vector<8x256xf32>,
    %c32_95 = arith.constant 32 : index
    %c0_96 = arith.constant 0 : index
    %148 = vector.load %arg6[%c32_95, %c0_96] : memref<72x256xf32, #tpu.memory_space<vmem>>, vector<8x256xf32>
    tpu.vector_store %arg6[%c32_95, %c0_96], %131 {strides = array<i32>} : memref<72x256xf32, #tpu.memory_space<vmem>>, vector<8x256xf32>,
    %c255_i32_97 = arith.constant 255 : i32
    %149 = tpu.dynamic_rotate %131 by %c255_i32_97 dim 1 : vector<8x256xf32>, i32 -> vector<8x256xf32>
    %150 = vector.broadcast %9 : vector<1x256xf32> to vector<8x256xf32>
    %151 = arith.mulf %149, %150 : vector<8x256xf32>
    %c40_98 = arith.constant 40 : index
    %c0_99 = arith.constant 0 : index
    %152 = vector.load %arg6[%c40_98, %c0_99] : memref<72x256xf32, #tpu.memory_space<vmem>>, vector<8x256xf32>
    tpu.vector_store %arg6[%c40_98, %c0_99], %151 {strides = array<i32>} : memref<72x256xf32, #tpu.memory_space<vmem>>, vector<8x256xf32>,
    %c241_i32_100 = arith.constant 241 : i32
    %153 = tpu.dynamic_rotate %131 by %c241_i32_100 dim 1 : vector<8x256xf32>, i32 -> vector<8x256xf32>
    %154 = vector.broadcast %11 : vector<1x256xf32> to vector<8x256xf32>
    %155 = arith.mulf %153, %154 : vector<8x256xf32>
    %c48_101 = arith.constant 48 : index
    %c0_102 = arith.constant 0 : index
    %156 = vector.load %arg6[%c48_101, %c0_102] : memref<72x256xf32, #tpu.memory_space<vmem>>, vector<8x256xf32>
    tpu.vector_store %arg6[%c48_101, %c0_102], %155 {strides = array<i32>} : memref<72x256xf32, #tpu.memory_space<vmem>>, vector<8x256xf32>,
    %c240_i32_103 = arith.constant 240 : i32
    %157 = tpu.dynamic_rotate %131 by %c240_i32_103 dim 1 : vector<8x256xf32>, i32 -> vector<8x256xf32>
    %158 = vector.broadcast %13 : vector<1x256xf32> to vector<8x256xf32>
    %159 = arith.mulf %157, %158 : vector<8x256xf32>
    %c56_104 = arith.constant 56 : index
    %c0_105 = arith.constant 0 : index
    %160 = vector.load %arg6[%c56_104, %c0_105] : memref<72x256xf32, #tpu.memory_space<vmem>>, vector<8x256xf32>
    tpu.vector_store %arg6[%c56_104, %c0_105], %159 {strides = array<i32>} : memref<72x256xf32, #tpu.memory_space<vmem>>, vector<8x256xf32>,
    %c239_i32_106 = arith.constant 239 : i32
    %161 = tpu.dynamic_rotate %131 by %c239_i32_106 dim 1 : vector<8x256xf32>, i32 -> vector<8x256xf32>
    %162 = vector.broadcast %15 : vector<1x256xf32> to vector<8x256xf32>
    %163 = arith.mulf %161, %162 : vector<8x256xf32>
    %c64_107 = arith.constant 64 : index
    %c0_108 = arith.constant 0 : index
    %164 = vector.load %arg6[%c64_107, %c0_108] : memref<72x256xf32, #tpu.memory_space<vmem>>, vector<8x256xf32>
    tpu.vector_store %arg6[%c64_107, %c0_108], %163 {strides = array<i32>} : memref<72x256xf32, #tpu.memory_space<vmem>>, vector<8x256xf32>,
    %c0_109 = arith.constant 0 : index
    %c0_110 = arith.constant 0 : index
    %165 = vector.load %arg6[%c0_109, %c0_110] : memref<72x256xf32, #tpu.memory_space<vmem>>, vector<72x256xf32>
    %cst_111 = arith.constant dense<0.000000e+00> : vector<8x256xf32>
    %166 = tpu.matmul %16, %165, %cst_111 {dimension_numbers = #tpu.dot_dimension_numbers<[1], [0], [0], [1], [0, 0, 1, 1], [], []>} : vector<8x72xf32>, vector<72x256xf32>, vector<8x256xf32> -> vector<8x256xf32>
    %cst_112 = arith.constant dense<0.000000e+00> : vector<8xf32>
    %167 = vector.multi_reduction <add>, %166, %cst_112 [1] : vector<8x256xf32> to vector<8xf32>
    %168 = vector.shape_cast %167 : vector<8xf32> to vector<8x1xf32>
    %cst_113 = arith.constant 2.560000e+02 : f32
    %169 = vector.broadcast %cst_113 : f32 to vector<8x1xf32>
    %170 = arith.divf %168, %169 : vector<8x1xf32>
    %171 = vector.broadcast %170 : vector<8x1xf32> to vector<8x256xf32>
    %172 = arith.subf %166, %171 : vector<8x256xf32>
    %173 = arith.mulf %172, %172 : vector<8x256xf32>
    %cst_114 = arith.constant dense<0.000000e+00> : vector<8xf32>
    %174 = vector.multi_reduction <add>, %173, %cst_114 [1] : vector<8x256xf32> to vector<8xf32>
    %175 = vector.shape_cast %174 : vector<8xf32> to vector<8x1xf32>
    %cst_115 = arith.constant 2.560000e+02 : f32
    %176 = vector.broadcast %cst_115 : f32 to vector<8x1xf32>
    %177 = arith.divf %175, %176 : vector<8x1xf32>
    %cst_116 = arith.constant 9.99999974E-6 : f32
    %178 = vector.broadcast %cst_116 : f32 to vector<8x1xf32>
    %179 = arith.addf %177, %178 : vector<8x1xf32>
    %180 = math.rsqrt %179 : vector<8x1xf32>
    %181 = vector.broadcast %180 : vector<8x1xf32> to vector<8x256xf32>
    %182 = arith.mulf %172, %181 : vector<8x256xf32>
    %cst_117 = arith.constant 0.000000e+00 : f32
    %183 = vector.broadcast %cst_117 : f32 to vector<8x256xf32>
    %184 = arith.maximumf %182, %183 : vector<8x256xf32>
    %c17_i32_118 = arith.constant 17 : i32
    %185 = tpu.dynamic_rotate %184 by %c17_i32_118 dim 1 : vector<8x256xf32>, i32 -> vector<8x256xf32>
    %186 = vector.broadcast %1 : vector<1x256xf32> to vector<8x256xf32>
    %187 = arith.mulf %185, %186 : vector<8x256xf32>
    %c0_119 = arith.constant 0 : index
    %c0_120 = arith.constant 0 : index
    %188 = vector.load %arg6[%c0_119, %c0_120] : memref<72x256xf32, #tpu.memory_space<vmem>>, vector<8x256xf32>
    tpu.vector_store %arg6[%c0_119, %c0_120], %187 {strides = array<i32>} : memref<72x256xf32, #tpu.memory_space<vmem>>, vector<8x256xf32>,
    %c16_i32_121 = arith.constant 16 : i32
    %189 = tpu.dynamic_rotate %184 by %c16_i32_121 dim 1 : vector<8x256xf32>, i32 -> vector<8x256xf32>
    %190 = vector.broadcast %3 : vector<1x256xf32> to vector<8x256xf32>
    %191 = arith.mulf %189, %190 : vector<8x256xf32>
    %c8_122 = arith.constant 8 : index
    %c0_123 = arith.constant 0 : index
    %192 = vector.load %arg6[%c8_122, %c0_123] : memref<72x256xf32, #tpu.memory_space<vmem>>, vector<8x256xf32>
    tpu.vector_store %arg6[%c8_122, %c0_123], %191 {strides = array<i32>} : memref<72x256xf32, #tpu.memory_space<vmem>>, vector<8x256xf32>,
    %c15_i32_124 = arith.constant 15 : i32
    %193 = tpu.dynamic_rotate %184 by %c15_i32_124 dim 1 : vector<8x256xf32>, i32 -> vector<8x256xf32>
    %194 = vector.broadcast %5 : vector<1x256xf32> to vector<8x256xf32>
    %195 = arith.mulf %193, %194 : vector<8x256xf32>
    %c16_125 = arith.constant 16 : index
    %c0_126 = arith.constant 0 : index
    %196 = vector.load %arg6[%c16_125, %c0_126] : memref<72x256xf32, #tpu.memory_space<vmem>>, vector<8x256xf32>
    tpu.vector_store %arg6[%c16_125, %c0_126], %195 {strides = array<i32>} : memref<72x256xf32, #tpu.memory_space<vmem>>, vector<8x256xf32>,
    %c1_i32_127 = arith.constant 1 : i32
    %197 = tpu.dynamic_rotate %184 by %c1_i32_127 dim 1 : vector<8x256xf32>, i32 -> vector<8x256xf32>
    %198 = vector.broadcast %7 : vector<1x256xf32> to vector<8x256xf32>
    %199 = arith.mulf %197, %198 : vector<8x256xf32>
    %c24_128 = arith.constant 24 : index
    %c0_129 = arith.constant 0 : index
    %200 = vector.load %arg6[%c24_128, %c0_129] : memref<72x256xf32, #tpu.memory_space<vmem>>, vector<8x256xf32>
    tpu.vector_store %arg6[%c24_128, %c0_129], %199 {strides = array<i32>} : memref<72x256xf32, #tpu.memory_space<vmem>>, vector<8x256xf32>,
    %c32_130 = arith.constant 32 : index
    %c0_131 = arith.constant 0 : index
    %201 = vector.load %arg6[%c32_130, %c0_131] : memref<72x256xf32, #tpu.memory_space<vmem>>, vector<8x256xf32>
    tpu.vector_store %arg6[%c32_130, %c0_131], %184 {strides = array<i32>} : memref<72x256xf32, #tpu.memory_space<vmem>>, vector<8x256xf32>,
    %c255_i32_132 = arith.constant 255 : i32
    %202 = tpu.dynamic_rotate %184 by %c255_i32_132 dim 1 : vector<8x256xf32>, i32 -> vector<8x256xf32>
    %203 = vector.broadcast %9 : vector<1x256xf32> to vector<8x256xf32>
    %204 = arith.mulf %202, %203 : vector<8x256xf32>
    %c40_133 = arith.constant 40 : index
    %c0_134 = arith.constant 0 : index
    %205 = vector.load %arg6[%c40_133, %c0_134] : memref<72x256xf32, #tpu.memory_space<vmem>>, vector<8x256xf32>
    tpu.vector_store %arg6[%c40_133, %c0_134], %204 {strides = array<i32>} : memref<72x256xf32, #tpu.memory_space<vmem>>, vector<8x256xf32>,
    %c241_i32_135 = arith.constant 241 : i32
    %206 = tpu.dynamic_rotate %184 by %c241_i32_135 dim 1 : vector<8x256xf32>, i32 -> vector<8x256xf32>
    %207 = vector.broadcast %11 : vector<1x256xf32> to vector<8x256xf32>
    %208 = arith.mulf %206, %207 : vector<8x256xf32>
    %c48_136 = arith.constant 48 : index
    %c0_137 = arith.constant 0 : index
    %209 = vector.load %arg6[%c48_136, %c0_137] : memref<72x256xf32, #tpu.memory_space<vmem>>, vector<8x256xf32>
    tpu.vector_store %arg6[%c48_136, %c0_137], %208 {strides = array<i32>} : memref<72x256xf32, #tpu.memory_space<vmem>>, vector<8x256xf32>,
    %c240_i32_138 = arith.constant 240 : i32
    %210 = tpu.dynamic_rotate %184 by %c240_i32_138 dim 1 : vector<8x256xf32>, i32 -> vector<8x256xf32>
    %211 = vector.broadcast %13 : vector<1x256xf32> to vector<8x256xf32>
    %212 = arith.mulf %210, %211 : vector<8x256xf32>
    %c56_139 = arith.constant 56 : index
    %c0_140 = arith.constant 0 : index
    %213 = vector.load %arg6[%c56_139, %c0_140] : memref<72x256xf32, #tpu.memory_space<vmem>>, vector<8x256xf32>
    tpu.vector_store %arg6[%c56_139, %c0_140], %212 {strides = array<i32>} : memref<72x256xf32, #tpu.memory_space<vmem>>, vector<8x256xf32>,
    %c239_i32_141 = arith.constant 239 : i32
    %214 = tpu.dynamic_rotate %184 by %c239_i32_141 dim 1 : vector<8x256xf32>, i32 -> vector<8x256xf32>
    %215 = vector.broadcast %15 : vector<1x256xf32> to vector<8x256xf32>
    %216 = arith.mulf %214, %215 : vector<8x256xf32>
    %c64_142 = arith.constant 64 : index
    %c0_143 = arith.constant 0 : index
    %217 = vector.load %arg6[%c64_142, %c0_143] : memref<72x256xf32, #tpu.memory_space<vmem>>, vector<8x256xf32>
    tpu.vector_store %arg6[%c64_142, %c0_143], %216 {strides = array<i32>} : memref<72x256xf32, #tpu.memory_space<vmem>>, vector<8x256xf32>,
    %c0_144 = arith.constant 0 : index
    %c0_145 = arith.constant 0 : index
    %218 = vector.load %arg6[%c0_144, %c0_145] : memref<72x256xf32, #tpu.memory_space<vmem>>, vector<72x256xf32>
    %cst_146 = arith.constant dense<0.000000e+00> : vector<8x256xf32>
    %219 = tpu.matmul %17, %218, %cst_146 {dimension_numbers = #tpu.dot_dimension_numbers<[1], [0], [0], [1], [0, 0, 1, 1], [], []>} : vector<8x72xf32>, vector<72x256xf32>, vector<8x256xf32> -> vector<8x256xf32>
    %cst_147 = arith.constant dense<0.000000e+00> : vector<8xf32>
    %220 = vector.multi_reduction <add>, %219, %cst_147 [1] : vector<8x256xf32> to vector<8xf32>
    %221 = vector.shape_cast %220 : vector<8xf32> to vector<8x1xf32>
    %cst_148 = arith.constant 2.560000e+02 : f32
    %222 = vector.broadcast %cst_148 : f32 to vector<8x1xf32>
    %223 = arith.divf %221, %222 : vector<8x1xf32>
    %224 = vector.broadcast %223 : vector<8x1xf32> to vector<8x256xf32>
    %225 = arith.subf %219, %224 : vector<8x256xf32>
    %226 = arith.mulf %225, %225 : vector<8x256xf32>
    %cst_149 = arith.constant dense<0.000000e+00> : vector<8xf32>
    %227 = vector.multi_reduction <add>, %226, %cst_149 [1] : vector<8x256xf32> to vector<8xf32>
    %228 = vector.shape_cast %227 : vector<8xf32> to vector<8x1xf32>
    %cst_150 = arith.constant 2.560000e+02 : f32
    %229 = vector.broadcast %cst_150 : f32 to vector<8x1xf32>
    %230 = arith.divf %228, %229 : vector<8x1xf32>
    %cst_151 = arith.constant 9.99999974E-6 : f32
    %231 = vector.broadcast %cst_151 : f32 to vector<8x1xf32>
    %232 = arith.addf %230, %231 : vector<8x1xf32>
    %233 = math.rsqrt %232 : vector<8x1xf32>
    %234 = vector.broadcast %233 : vector<8x1xf32> to vector<8x256xf32>
    %235 = arith.mulf %225, %234 : vector<8x256xf32>
    %cst_152 = arith.constant 1.000000e-01 : f32
    %236 = vector.broadcast %cst_152 : f32 to vector<8x256xf32>
    %237 = arith.mulf %236, %235 : vector<8x256xf32>
    %238 = arith.addf %131, %237 : vector<8x256xf32>
    %c1_153 = arith.constant 1 : index
    %c0_154 = arith.constant 0 : index
    %c0_155 = arith.constant 0 : index
    %239 = vector.load %arg5[%c1_153, %c0_154, %c0_155] : memref<2x8x256xf32, #tpu.memory_space<vmem>>, vector<1x8x256xf32>
    %240 = vector.shape_cast %239 : vector<1x8x256xf32> to vector<8x256xf32>
    %241 = vector.shape_cast %238 : vector<8x256xf32> to vector<1x8x256xf32>
    tpu.vector_store %arg5[%c1_153, %c0_154, %c0_155], %241 {strides = array<i32>} : memref<2x8x256xf32, #tpu.memory_space<vmem>>, vector<1x8x256xf32>,
    return
  }
  func.func @transform_0(%arg0: i32) -> (i32, i32, i32) {
    %c0_i32 = arith.constant 0 : i32
    %c0_i32_0 = arith.constant 0 : i32
    %c0_i32_1 = arith.constant 0 : i32
    return %arg0, %c0_i32, %c0_i32_0 : i32, i32, i32
  }
  func.func @transform_1(%arg0: i32) -> (i32, i32, i32) {
    %c0_i32 = arith.constant 0 : i32
    %c0_i32_0 = arith.constant 0 : i32
    %c0_i32_1 = arith.constant 0 : i32
    %c0_i32_2 = arith.constant 0 : i32
    return %c0_i32, %c0_i32_0, %c0_i32_1 : i32, i32, i32
  }
  func.func @transform_2(%arg0: i32) -> (i32, i32) {
    %c0_i32 = arith.constant 0 : i32
    %c0_i32_0 = arith.constant 0 : i32
    %c0_i32_1 = arith.constant 0 : i32
    return %c0_i32, %c0_i32_0 : i32, i32
  }
  func.func @transform_3(%arg0: i32) -> (i32, i32) {
    %c0_i32 = arith.constant 0 : i32
    %c0_i32_0 = arith.constant 0 : i32
    %c0_i32_1 = arith.constant 0 : i32
    return %c0_i32, %c0_i32_0 : i32, i32
  }
  func.func @transform_4(%arg0: i32) -> (i32, i32, i32) {
    %c0_i32 = arith.constant 0 : i32
    %c0_i32_0 = arith.constant 0 : i32
    %c0_i32_1 = arith.constant 0 : i32
    return %arg0, %c0_i32, %c0_i32_0 : i32, i32, i32
  }
}

</mosaic_0001>

<llo_original>
// kernel: resblock_forward.1
$region0: #{resblock_forward.1}
  #allocation0 [shape = 'u32[]', space=smem, size = 0x4, offset = 0x4, fixed_abs, tag = 'smem constant byte address 0x4 - core index']
  #allocation1 [shape = 'u32[144,128]{1,0:T(1,128)}', space=vmem, size = 0x12000, scoped, tag = 'internal scratch']
  #allocation2 [shape = 'f32[72,256]{1,0:T(8,128)}', space=vmem, size = 0x12000, scoped, tag = 'scratch operand']
  %s0 = inlined_call_operand.vmem [shape: f32[2,8,256], index: 0, kind: input, shape index: {}, may-alias: {0,4}]
  %s1 = inlined_call_operand.vmem [shape: f32[9,1,256], index: 1, kind: input, shape index: {}]
  %s2 = inlined_call_operand.vmem [shape: f32[8,72], index: 2, kind: input, shape index: {}]
  %s3 = inlined_call_operand.vmem [shape: f32[8,72], index: 3, kind: input, shape index: {}]
  %s4 = inlined_call_operand.vmem [shape: f32[2,8,256], index: 4, kind: output, shape index: {}, may-alias: {0,4}]
  %s5 = sld [smem:[#allocation0]]
  $region26: #{resblock_forward.1} parent=0
    _
  %s7 = ssub.s32 1, %s5
  %s8 = scalar_select 0, %s7, %s5
  // Predicated region
  $region2: #{resblock_forward.1} parent=0 // pred_check
    _
  $region3: #{resblock_forward.1} parent=0 // pred_check_branch
    %10 = sbr.rel (0) target = $region5
  $region4: #{resblock_forward.1} parent=0 // pred_region
    _
  $region5: #{resblock_forward.1} parent=0 // pred_fallthru
    _
  // Predicated region
  $region6: #{resblock_forward.1} parent=0 // pred_check
    _
  $region7: #{resblock_forward.1} parent=0 // pred_check_branch
    %12 = sbr.rel (0) target = $region9
  $region8: #{resblock_forward.1} parent=0 // pred_region
    _
  $region9: #{resblock_forward.1} parent=0 // pred_fallthru
    _
  // Predicated region
  $region10: #{resblock_forward.1} parent=0 // pred_check
    _
  $region11: #{resblock_forward.1} parent=0 // pred_check_branch
    %14 = sbr.rel (0) target = $region13
  $region12: #{resblock_forward.1} parent=0 // pred_region
    _
  $region13: #{resblock_forward.1} parent=0 // pred_fallthru
    _
  // Predicated region
  $region14: #{resblock_forward.1} parent=0 // pred_check
    _
  $region15: #{resblock_forward.1} parent=0 // pred_check_branch
    %16 = sbr.rel (0) target = $region17
  $region16: #{resblock_forward.1} parent=0 // pred_region
    _
  $region17: #{resblock_forward.1} parent=0 // pred_fallthru
    _
  %v17 = vld [vmem:[%s1] sm:$0x3]
  %s18 = scalar_lea.vmem %s1, 2
  %v19 = vld [vmem:[%s18] sm:$0x3]
  %s20 = scalar_lea.vmem %s1, 4
  %v21 = vld [vmem:[%s20] sm:$0x3]
  %s22 = scalar_lea.vmem %s1, 6
  %v23 = vld [vmem:[%s22] sm:$0x3]
  %s24 = scalar_lea.vmem %s1, 10
  %v25 = vld [vmem:[%s24] sm:$0x3]
  %s26 = scalar_lea.vmem %s1, 12
  %v27 = vld [vmem:[%s26] sm:$0x3]
  %s28 = scalar_lea.vmem %s1, 14
  %v29 = vld [vmem:[%s28] sm:$0x3]
  %s30 = scalar_lea.vmem %s1, 16
  %v31 = vld [vmem:[%s30] sm:$0x3]
  %v32 = vld [vmem:[%s2] sm:$0xff]
  %v33 = vld [vmem:[%s3] sm:$0xff]
  %v34 = vld [vmem:[%s0] sm:$0xff]
  %v35 = vld [vmem:[%s0 + $0x8] sm:$0xff]
  %36 = vrot.lane.b32.xlu0 %v34, 17
  %v37 = vpop.permute.xlu0 %36
  %38 = vrot.lane.b32.xlu0 %v35, 17
  %v39 = vpop.permute.xlu0 %38
  %v40 = vlaneseq
  %v41 = vand.u32 %v40, 127
  %vm42 = vcmp.lt.s32.totalorder %v41, 17
  %v43 = vsel %vm42, %v37, %v39
  %v44 = vsel %vm42, %v39, %v37
  %v46 = vlaneseq
  %v47 = vshrl.u32 %v46, 7
  %v48 = vsub.s32 0, %v47
  %v49 = vrot.slane %v17, %v48
  %v50 = vlaneseq
  %v51 = vshrl.u32 %v50, 7
  %v52 = vsub.s32 1, %v51
  %v53 = vrot.slane %v17, %v52
  %v56 = vmul.f32 %v44, %v49
  %v57 = vmul.f32 %v43, %v53
  %58 = vst [vmem:[#allocation2] sm:$0xff] %v56
  %59 = vst [vmem:[#allocation2 + $0x8] sm:$0xff] %v57
  %60 = vrot.lane.b32.xlu0 %v34, 16
  %v61 = vpop.permute.xlu0 %60
  %62 = vrot.lane.b32.xlu0 %v35, 16
  %v63 = vpop.permute.xlu0 %62
  %vm64 = vcmp.lt.s32.totalorder %v41, 16
  %v65 = vsel %vm64, %v61, %v63
  %v66 = vsel %vm64, %v63, %v61
  %v68 = vlaneseq
  %v69 = vshrl.u32 %v68, 7
  %v70 = vsub.s32 0, %v69
  %v71 = vrot.slane %v19, %v70
  %v72 = vlaneseq
  %v73 = vshrl.u32 %v72, 7
  %v74 = vsub.s32 1, %v73
  %v75 = vrot.slane %v19, %v74
  %v78 = vmul.f32 %v66, %v71
  %v79 = vmul.f32 %v65, %v75
  %80 = vst [vmem:[#allocation2 + $0x10] sm:$0xff] %v78
  %81 = vst [vmem:[#allocation2 + $0x18] sm:$0xff] %v79
  %82 = vrot.lane.b32.xlu0 %v34, 15
  %v83 = vpop.permute.xlu0 %82
  %84 = vrot.lane.b32.xlu0 %v35, 15
  %v85 = vpop.permute.xlu0 %84
  %vm86 = vcmp.lt.s32.totalorder %v41, 15
  %v87 = vsel %vm86, %v83, %v85
  %v88 = vsel %vm86, %v85, %v83
  %v90 = vlaneseq
  %v91 = vshrl.u32 %v90, 7
  %v92 = vsub.s32 0, %v91
  %v93 = vrot.slane %v21, %v92
  %v94 = vlaneseq
  %v95 = vshrl.u32 %v94, 7
  %v96 = vsub.s32 1, %v95
  %v97 = vrot.slane %v21, %v96
  %v100 = vmul.f32 %v88, %v93
  %v101 = vmul.f32 %v87, %v97
  %102 = vst [vmem:[#allocation2 + $0x20] sm:$0xff] %v100
  %103 = vst [vmem:[#allocation2 + $0x28] sm:$0xff] %v101
  %104 = vrot.lane.b32.xlu0 %v34, 1
  %v105 = vpop.permute.xlu0 %104
  %106 = vrot.lane.b32.xlu0 %v35, 1
  %v107 = vpop.permute.xlu0 %106
  %vm108 = vcmp.lt.s32.totalorder %v41, 1
  %v109 = vsel %vm108, %v105, %v107
  %v110 = vsel %vm108, %v107, %v105
  %v112 = vlaneseq
  %v113 = vshrl.u32 %v112, 7
  %v114 = vsub.s32 0, %v113
  %v115 = vrot.slane %v23, %v114
  %v116 = vlaneseq
  %v117 = vshrl.u32 %v116, 7
  %v118 = vsub.s32 1, %v117
  %v119 = vrot.slane %v23, %v118
  %v122 = vmul.f32 %v110, %v115
  %v123 = vmul.f32 %v109, %v119
  %124 = vst [vmem:[#allocation2 + $0x30] sm:$0xff] %v122
  %125 = vst [vmem:[#allocation2 + $0x38] sm:$0xff] %v123
  %126 = vst [vmem:[#allocation2 + $0x40] sm:$0xff] %v34
  %127 = vst [vmem:[#allocation2 + $0x48] sm:$0xff] %v35
  %128 = vrot.lane.b32.xlu0 %v34, 127
  %v129 = vpop.permute.xlu0 %128
  %130 = vrot.lane.b32.xlu0 %v35, 127
  %v131 = vpop.permute.xlu0 %130
  %vm132 = vcmp.lt.s32.totalorder %v41, 127
  %v133 = vsel %vm132, %v129, %v131
  %v134 = vsel %vm132, %v131, %v129
  %v136 = vlaneseq
  %v137 = vshrl.u32 %v136, 7
  %v138 = vsub.s32 0, %v137
  %v139 = vrot.slane %v25, %v138
  %v140 = vlaneseq
  %v141 = vshrl.u32 %v140, 7
  %v142 = vsub.s32 1, %v141
  %v143 = vrot.slane %v25, %v142
  %v146 = vmul.f32 %v133, %v139
  %v147 = vmul.f32 %v134, %v143
  %148 = vst [vmem:[#allocation2 + $0x50] sm:$0xff] %v146
  %149 = vst [vmem:[#allocation2 + $0x58] sm:$0xff] %v147
  %150 = vrot.lane.b32.xlu0 %v34, 113
  %v151 = vpop.permute.xlu0 %150
  %152 = vrot.lane.b32.xlu0 %v35, 113
  %v153 = vpop.permute.xlu0 %152
  %vm154 = vcmp.lt.s32.totalorder %v41, 113
  %v155 = vsel %vm154, %v151, %v153
  %v156 = vsel %vm154, %v153, %v151
  %v158 = vlaneseq
  %v159 = vshrl.u32 %v158, 7
  %v160 = vsub.s32 0, %v159
  %v161 = vrot.slane %v27, %v160
  %v162 = vlaneseq
  %v163 = vshrl.u32 %v162, 7
  %v164 = vsub.s32 1, %v163
  %v165 = vrot.slane %v27, %v164
  %v168 = vmul.f32 %v155, %v161
  %v169 = vmul.f32 %v156, %v165
  %170 = vst [vmem:[#allocation2 + $0x60] sm:$0xff] %v168
  %171 = vst [vmem:[#allocation2 + $0x68] sm:$0xff] %v169
  %172 = vrot.lane.b32.xlu0 %v34, 112
  %v173 = vpop.permute.xlu0 %172
  %174 = vrot.lane.b32.xlu0 %v35, 112
  %v175 = vpop.permute.xlu0 %174
  %vm176 = vcmp.lt.s32.totalorder %v41, 112
  %v177 = vsel %vm176, %v173, %v175
  %v178 = vsel %vm176, %v175, %v173
  %v180 = vlaneseq
  %v181 = vshrl.u32 %v180, 7
  %v182 = vsub.s32 0, %v181
  %v183 = vrot.slane %v29, %v182
  %v184 = vlaneseq
  %v185 = vshrl.u32 %v184, 7
  %v186 = vsub.s32 1, %v185
  %v187 = vrot.slane %v29, %v186
  %v190 = vmul.f32 %v177, %v183
  %v191 = vmul.f32 %v178, %v187
  %192 = vst [vmem:[#allocation2 + $0x70] sm:$0xff] %v190
  %193 = vst [vmem:[#allocation2 + $0x78] sm:$0xff] %v191
  %194 = vrot.lane.b32.xlu0 %v34, 111
  %v195 = vpop.permute.xlu0 %194
  %196 = vrot.lane.b32.xlu0 %v35, 111
  %v197 = vpop.permute.xlu0 %196
  %vm198 = vcmp.lt.s32.totalorder %v41, 111
  %v199 = vsel %vm198, %v195, %v197
  %v200 = vsel %vm198, %v197, %v195
  %v202 = vlaneseq
  %v203 = vshrl.u32 %v202, 7
  %v204 = vsub.s32 0, %v203
  %v205 = vrot.slane %v31, %v204
  %v206 = vlaneseq
  %v207 = vshrl.u32 %v206, 7
  %v208 = vsub.s32 1, %v207
  %v209 = vrot.slane %v31, %v208
  %v212 = vmul.f32 %v199, %v205
  %v213 = vmul.f32 %v200, %v209
  %214 = vst [vmem:[#allocation2 + $0x80] sm:$0xff] %v212
  %215 = vst [vmem:[#allocation2 + $0x88] sm:$0xff] %v213
  %v216 = vld [vmem:[#allocation2] sm:$0xff]
  %v217 = vld [vmem:[#allocation2 + $0x8] sm:$0xff]
  %v218 = vld [vmem:[#allocation2 + $0x10] sm:$0xff]
  %v219 = vld [vmem:[#allocation2 + $0x18] sm:$0xff]
  %v220 = vld [vmem:[#allocation2 + $0x20] sm:$0xff]
  %v221 = vld [vmem:[#allocation2 + $0x28] sm:$0xff]
  %v222 = vld [vmem:[#allocation2 + $0x30] sm:$0xff]
  %v223 = vld [vmem:[#allocation2 + $0x38] sm:$0xff]
  %v224 = vld [vmem:[#allocation2 + $0x40] sm:$0xff]
  %v225 = vld [vmem:[#allocation2 + $0x48] sm:$0xff]
  %v226 = vld [vmem:[#allocation2 + $0x50] sm:$0xff]
  %v227 = vld [vmem:[#allocation2 + $0x58] sm:$0xff]
  %v228 = vld [vmem:[#allocation2 + $0x60] sm:$0xff]
  %v229 = vld [vmem:[#allocation2 + $0x68] sm:$0xff]
  %v230 = vld [vmem:[#allocation2 + $0x70] sm:$0xff]
  %v231 = vld [vmem:[#allocation2 + $0x78] sm:$0xff]
  %v232 = vld [vmem:[#allocation2 + $0x80] sm:$0xff]
  %v233 = vld [vmem:[#allocation2 + $0x88] sm:$0xff]
  %vm234 = vcmask 588800
  %v236 = vsel %vm234, %v32, 0
  %238 = vmatprep.subr.mxu0 0.0
  %239 = vmatpush1.msra.mxu0 0.0
  %240 = vmatprep.subr.mxu0 0.0
  %241 = vmatpush1.msra.mxu0 0.0
  %242 = vmatprep.subr.mxu0 0.0
  %243 = vmatpush1.msra.mxu0 0.0
  %244 = vmatprep.subr.mxu0 0.0
  %245 = vmatpush1.msra.mxu0 0.0
  %246 = vmatprep.subr.mxu0 0.0
  %247 = vmatpush1.msra.mxu0 0.0
  %248 = vmatprep.subr.mxu0 0.0
  %249 = vmatpush1.msra.mxu0 0.0
  %250 = vmatprep.subr.mxu0 0.0
  %251 = vmatpush1.msra.mxu0 0.0
  %252 = vmatprep.subr.mxu0 %v233
  %253 = vmatpush1.msra.mxu0 %v232
  %254 = vmatprep.subr.mxu0 %v231
  %255 = vmatpush1.msra.mxu0 %v230
  %256 = vmatprep.subr.mxu0 %v229
  %257 = vmatpush1.msra.mxu0 %v228
  %258 = vmatprep.subr.mxu0 %v227
  %259 = vmatpush1.msra.mxu0 %v226
  %260 = vmatprep.subr.mxu0 %v225
  %261 = vmatpush1.msra.mxu0 %v224
  %262 = vmatprep.subr.mxu0 %v223
  %263 = vmatpush1.msra.mxu0 %v222
  %264 = vmatprep.subr.mxu0 %v221
  %265 = vmatpush1.msra.mxu0 %v220
  %266 = vmatprep.subr.mxu0 %v219
  %267 = vmatpush1.msra.mxu0 %v218
  %268 = vmatprep.subr.mxu0 %v217
  %269 = vmatpush1.msra.mxu0 %v216
  %270 = vmatprep.subr.mxu0 0.0
  %271 = vmatpush2.msra.mxu0 0.0
  %272 = vmatprep.subr.mxu0 0.0
  %273 = vmatpush2.msra.mxu0 0.0
  %274 = vmatprep.subr.mxu0 0.0
  %275 = vmatpush2.msra.mxu0 0.0
  %276 = vmatprep.subr.mxu0 0.0
  %277 = vmatpush2.msra.mxu0 0.0
  %278 = vmatprep.subr.mxu0 0.0
  %279 = vmatpush2.msra.mxu0 0.0
  %280 = vmatprep.subr.mxu0 0.0
  %281 = vmatpush2.msra.mxu0 0.0
  %282 = vmatprep.subr.mxu0 0.0
  %283 = vmatpush2.msra.mxu0 0.0
  %284 = vmatprep.subr.mxu0 0.0
  %285 = vmatpush2.msra.mxu0 0.0
  %286 = vmatprep.subr.mxu0 0.0
  %287 = vmatpush2.msra.mxu0 0.0
  %288 = vmatprep.subr.mxu0 0.0
  %289 = vmatpush2.msra.mxu0 0.0
  %290 = vmatprep.subr.mxu0 0.0
  %291 = vmatpush2.msra.mxu0 0.0
  %292 = vmatprep.subr.mxu0 0.0
  %293 = vmatpush2.msra.mxu0 0.0
  %294 = vmatprep.subr.mxu0 0.0
  %295 = vmatpush2.msra.mxu0 0.0
  %296 = vmatprep.subr.mxu0 0.0
  %297 = vmatpush2.msra.mxu0 0.0
  %298 = vmatprep.subr.mxu0 0.0
  %299 = vmatpush2.msra.mxu0 0.0
  %300 = vmatprep.subr.mxu0 0.0
  %301 = vmatpush2.msra.mxu0 0.0
  %302 = vmatprep.mubr.f32.mxu0 0.0
  %303 = vmatmul.mubr.f32.gmra.mxu0 %v236
  %v304 = vpop.f32.mrf.mxu0
  %v305 = vadd.f32 0.0, %v304
  %v306 = vpop.f32.mrf.mxu0
  %v307 = vadd.f32 0.0, %v306
  %308 = vdwg.mxu0
  %v309 = vadd.f32 %v305, %v307
  %310 = vadd.xlane.f32.xlu0 %v309
  %v311 = vpop.xlane.xlu0 %310
  %v312 = vrcp.pop 256.0
  %v313 = vmul.f32 %v311, %v312
  %v314 = vsub.f32 %v305, %v313
  %v315 = vsub.f32 %v307, %v313
  %v316 = vmul.f32 %v314, %v314
  %v317 = vmul.f32 %v315, %v315
  %v318 = vadd.f32 %v316, %v317
  %319 = vadd.xlane.f32.xlu0 %v318
  %v320 = vpop.xlane.xlu0 %319
  %v321 = vmul.f32 %v320, %v312
  %v322 = vadd.f32 %v321, 1e-05
  %v323 = vrsqrt.pop %v322
  %v324 = vmul.f32 %v314, %v323
  %v325 = vmul.f32 %v315, %v323
  %v326 = vmax.f32 %v324, 0.0
  %v327 = vmax.f32 %v325, 0.0
  %328 = vrot.lane.b32.xlu0 %v326, 17
  %v329 = vpop.permute.xlu0 %328
  %330 = vrot.lane.b32.xlu0 %v327, 17
  %v331 = vpop.permute.xlu0 %330
  %v332 = vsel %vm42, %v329, %v331
  %v333 = vsel %vm42, %v331, %v329
  %v334 = vmul.f32 %v333, %v49
  %v335 = vmul.f32 %v332, %v53
  %336 = vst [vmem:[#allocation2] sm:$0xff] %v334
  %337 = vst [vmem:[#allocation2 + $0x8] sm:$0xff] %v335
  %338 = vrot.lane.b32.xlu0 %v326, 16
  %v339 = vpop.permute.xlu0 %338
  %340 = vrot.lane.b32.xlu0 %v327, 16
  %v341 = vpop.permute.xlu0 %340
  %v342 = vsel %vm64, %v339, %v341
  %v343 = vsel %vm64, %v341, %v339
  %v344 = vmul.f32 %v343, %v71
  %v345 = vmul.f32 %v342, %v75
  %346 = vst [vmem:[#allocation2 + $0x10] sm:$0xff] %v344
  %347 = vst [vmem:[#allocation2 + $0x18] sm:$0xff] %v345
  %348 = vrot.lane.b32.xlu0 %v326, 15
  %v349 = vpop.permute.xlu0 %348
  %350 = vrot.lane.b32.xlu0 %v327, 15
  %v351 = vpop.permute.xlu0 %350
  %v352 = vsel %vm86, %v349, %v351
  %v353 = vsel %vm86, %v351, %v349
  %v354 = vmul.f32 %v353, %v93
  %v355 = vmul.f32 %v352, %v97
  %356 = vst [vmem:[#allocation2 + $0x20] sm:$0xff] %v354
  %357 = vst [vmem:[#allocation2 + $0x28] sm:$0xff] %v355
  %358 = vrot.lane.b32.xlu0 %v326, 1
  %v359 = vpop.permute.xlu0 %358
  %360 = vrot.lane.b32.xlu0 %v327, 1
  %v361 = vpop.permute.xlu0 %360
  %v362 = vsel %vm108, %v359, %v361
  %v363 = vsel %vm108, %v361, %v359
  %v364 = vmul.f32 %v363, %v115
  %v365 = vmul.f32 %v362, %v119
  %366 = vst [vmem:[#allocation2 + $0x30] sm:$0xff] %v364
  %367 = vst [vmem:[#allocation2 + $0x38] sm:$0xff] %v365
  %368 = vst [vmem:[#allocation2 + $0x40] sm:$0xff] %v326
  %369 = vst [vmem:[#allocation2 + $0x48] sm:$0xff] %v327
  %370 = vrot.lane.b32.xlu0 %v326, 127
  %v371 = vpop.permute.xlu0 %370
  %372 = vrot.lane.b32.xlu0 %v327, 127
  %v373 = vpop.permute.xlu0 %372
  %v374 = vsel %vm132, %v371, %v373
  %v375 = vsel %vm132, %v373, %v371
  %v376 = vmul.f32 %v374, %v139
  %v377 = vmul.f32 %v375, %v143
  %378 = vst [vmem:[#allocation2 + $0x50] sm:$0xff] %v376
  %379 = vst [vmem:[#allocation2 + $0x58] sm:$0xff] %v377
  %380 = vrot.lane.b32.xlu0 %v326, 113
  %v381 = vpop.permute.xlu0 %380
  %382 = vrot.lane.b32.xlu0 %v327, 113
  %v383 = vpop.permute.xlu0 %382
  %v384 = vsel %vm154, %v381, %v383
  %v385 = vsel %vm154, %v383, %v381
  %v386 = vmul.f32 %v384, %v161
  %v387 = vmul.f32 %v385, %v165
  %388 = vst [vmem:[#allocation2 + $0x60] sm:$0xff] %v386
  %389 = vst [vmem:[#allocation2 + $0x68] sm:$0xff] %v387
  %390 = vrot.lane.b32.xlu0 %v326, 112
  %v391 = vpop.permute.xlu0 %390
  %392 = vrot.lane.b32.xlu0 %v327, 112
  %v393 = vpop.permute.xlu0 %392
  %v394 = vsel %vm176, %v391, %v393
  %v395 = vsel %vm176, %v393, %v391
  %v396 = vmul.f32 %v394, %v183
  %v397 = vmul.f32 %v395, %v187
  %398 = vst [vmem:[#allocation2 + $0x70] sm:$0xff] %v396
  %399 = vst [vmem:[#allocation2 + $0x78] sm:$0xff] %v397
  %400 = vrot.lane.b32.xlu0 %v326, 111
  %v401 = vpop.permute.xlu0 %400
  %402 = vrot.lane.b32.xlu0 %v327, 111
  %v403 = vpop.permute.xlu0 %402
  %v404 = vsel %vm198, %v401, %v403
  %v405 = vsel %vm198, %v403, %v401
  %v406 = vmul.f32 %v404, %v205
  %v407 = vmul.f32 %v405, %v209
  %408 = vst [vmem:[#allocation2 + $0x80] sm:$0xff] %v406
  %409 = vst [vmem:[#allocation2 + $0x88] sm:$0xff] %v407
  %v410 = vld [vmem:[#allocation2] sm:$0xff]
  %v411 = vld [vmem:[#allocation2 + $0x8] sm:$0xff]
  %v412 = vld [vmem:[#allocation2 + $0x10] sm:$0xff]
  %v413 = vld [vmem:[#allocation2 + $0x18] sm:$0xff]
  %v414 = vld [vmem:[#allocation2 + $0x20] sm:$0xff]
  %v415 = vld [vmem:[#allocation2 + $0x28] sm:$0xff]
  %v416 = vld [vmem:[#allocation2 + $0x30] sm:$0xff]
  %v417 = vld [vmem:[#allocation2 + $0x38] sm:$0xff]
  %v418 = vld [vmem:[#allocation2 + $0x40] sm:$0xff]
  %v419 = vld [vmem:[#allocation2 + $0x48] sm:$0xff]
  %v420 = vld [vmem:[#allocation2 + $0x50] sm:$0xff]
  %v421 = vld [vmem:[#allocation2 + $0x58] sm:$0xff]
  %v422 = vld [vmem:[#allocation2 + $0x60] sm:$0xff]
  %v423 = vld [vmem:[#allocation2 + $0x68] sm:$0xff]
  %v424 = vld [vmem:[#allocation2 + $0x70] sm:$0xff]
  %v425 = vld [vmem:[#allocation2 + $0x78] sm:$0xff]
  %v426 = vld [vmem:[#allocation2 + $0x80] sm:$0xff]
  %v427 = vld [vmem:[#allocation2 + $0x88] sm:$0xff]
  %v429 = vsel %vm234, %v33, 0
  %431 = vmatprep.subr.mxu0 0.0
  %432 = vmatpush1.msra.mxu0 0.0
  %433 = vmatprep.subr.mxu0 0.0
  %434 = vmatpush1.msra.mxu0 0.0
  %435 = vmatprep.subr.mxu0 0.0
  %436 = vmatpush1.msra.mxu0 0.0
  %437 = vmatprep.subr.mxu0 0.0
  %438 = vmatpush1.msra.mxu0 0.0
  %439 = vmatprep.subr.mxu0 0.0
  %440 = vmatpush1.msra.mxu0 0.0
  %441 = vmatprep.subr.mxu0 0.0
  %442 = vmatpush1.msra.mxu0 0.0
  %443 = vmatprep.subr.mxu0 0.0
  %444 = vmatpush1.msra.mxu0 0.0
  %445 = vmatprep.subr.mxu0 %v427
  %446 = vmatpush1.msra.mxu0 %v426
  %447 = vmatprep.subr.mxu0 %v425
  %448 = vmatpush1.msra.mxu0 %v424
  %449 = vmatprep.subr.mxu0 %v423
  %450 = vmatpush1.msra.mxu0 %v422
  %451 = vmatprep.subr.mxu0 %v421
  %452 = vmatpush1.msra.mxu0 %v420
  %453 = vmatprep.subr.mxu0 %v419
  %454 = vmatpush1.msra.mxu0 %v418
  %455 = vmatprep.subr.mxu0 %v417
  %456 = vmatpush1.msra.mxu0 %v416
  %457 = vmatprep.subr.mxu0 %v415
  %458 = vmatpush1.msra.mxu0 %v414
  %459 = vmatprep.subr.mxu0 %v413
  %460 = vmatpush1.msra.mxu0 %v412
  %461 = vmatprep.subr.mxu0 %v411
  %462 = vmatpush1.msra.mxu0 %v410
  %463 = vmatprep.subr.mxu0 0.0
  %464 = vmatpush2.msra.mxu0 0.0
  %465 = vmatprep.subr.mxu0 0.0
  %466 = vmatpush2.msra.mxu0 0.0
  %467 = vmatprep.subr.mxu0 0.0
  %468 = vmatpush2.msra.mxu0 0.0
  %469 = vmatprep.subr.mxu0 0.0
  %470 = vmatpush2.msra.mxu0 0.0
  %471 = vmatprep.subr.mxu0 0.0
  %472 = vmatpush2.msra.mxu0 0.0
  %473 = vmatprep.subr.mxu0 0.0
  %474 = vmatpush2.msra.mxu0 0.0
  %475 = vmatprep.subr.mxu0 0.0
  %476 = vmatpush2.msra.mxu0 0.0
  %477 = vmatprep.subr.mxu0 0.0
  %478 = vmatpush2.msra.mxu0 0.0
  %479 = vmatprep.subr.mxu0 0.0
  %480 = vmatpush2.msra.mxu0 0.0
  %481 = vmatprep.subr.mxu0 0.0
  %482 = vmatpush2.msra.mxu0 0.0
  %483 = vmatprep.subr.mxu0 0.0
  %484 = vmatpush2.msra.mxu0 0.0
  %485 = vmatprep.subr.mxu0 0.0
  %486 = vmatpush2.msra.mxu0 0.0
  %487 = vmatprep.subr.mxu0 0.0
  %488 = vmatpush2.msra.mxu0 0.0
  %489 = vmatprep.subr.mxu0 0.0
  %490 = vmatpush2.msra.mxu0 0.0
  %491 = vmatprep.subr.mxu0 0.0
  %492 = vmatpush2.msra.mxu0 0.0
  %493 = vmatprep.subr.mxu0 0.0
  %494 = vmatpush2.msra.mxu0 0.0
  %495 = vmatprep.mubr.f32.mxu0 0.0
  %496 = vmatmul.mubr.f32.gmra.mxu0 %v429
  %v497 = vpop.f32.mrf.mxu0
  %v498 = vadd.f32 0.0, %v497
  %v499 = vpop.f32.mrf.mxu0
  %v500 = vadd.f32 0.0, %v499
  %501 = vdwg.mxu0
  %v502 = vadd.f32 %v498, %v500
  %503 = vadd.xlane.f32.xlu0 %v502
  %v504 = vpop.xlane.xlu0 %503
  %v505 = vmul.f32 %v504, %v312
  %v506 = vsub.f32 %v498, %v505
  %v507 = vsub.f32 %v500, %v505
  %v508 = vmul.f32 %v506, %v506
  %v509 = vmul.f32 %v507, %v507
  %v510 = vadd.f32 %v508, %v509
  %511 = vadd.xlane.f32.xlu0 %v510
  %v512 = vpop.xlane.xlu0 %511
  %v513 = vmul.f32 %v512, %v312
  %v514 = vadd.f32 %v513, 1e-05
  %v515 = vrsqrt.pop %v514
  %v516 = vmul.f32 %v506, %v515
  %v517 = vmul.f32 %v507, %v515
  %v518 = vmul.f32 %v516, 0.1
  %v519 = vmul.f32 %v517, 0.1
  %v520 = vadd.f32 %v34, %v518
  %v521 = vadd.f32 %v35, %v519
  %522 = vst [vmem:[%s4] sm:$0xff] %v520
  %523 = vst [vmem:[%s4 + $0x8] sm:$0xff] %v521
  %s524 = scalar_lea.vmem %s0, 16
  %v525 = vld [vmem:[%s524] sm:$0xff]
  %v526 = vld [vmem:[%s524 + $0x8] sm:$0xff]
  %527 = vrot.lane.b32.xlu0 %v525, 17
  %v528 = vpop.permute.xlu0 %527
  %529 = vrot.lane.b32.xlu0 %v526, 17
  %v530 = vpop.permute.xlu0 %529
  %v531 = vsel %vm42, %v528, %v530
  %v532 = vsel %vm42, %v530, %v528
  %v533 = vmul.f32 %v532, %v49
  %v534 = vmul.f32 %v531, %v53
  %535 = vst [vmem:[#allocation2] sm:$0xff] %v533
  %536 = vst [vmem:[#allocation2 + $0x8] sm:$0xff] %v534
  %537 = vrot.lane.b32.xlu0 %v525, 16
  %v538 = vpop.permute.xlu0 %537
  %539 = vrot.lane.b32.xlu0 %v526, 16
  %v540 = vpop.permute.xlu0 %539
  %v541 = vsel %vm64, %v538, %v540
  %v542 = vsel %vm64, %v540, %v538
  %v543 = vmul.f32 %v542, %v71
  %v544 = vmul.f32 %v541, %v75
  %545 = vst [vmem:[#allocation2 + $0x10] sm:$0xff] %v543
  %546 = vst [vmem:[#allocation2 + $0x18] sm:$0xff] %v544
  %547 = vrot.lane.b32.xlu0 %v525, 15
  %v548 = vpop.permute.xlu0 %547
  %549 = vrot.lane.b32.xlu0 %v526, 15
  %v550 = vpop.permute.xlu0 %549
  %v551 = vsel %vm86, %v548, %v550
  %v552 = vsel %vm86, %v550, %v548
  %v553 = vmul.f32 %v552, %v93
  %v554 = vmul.f32 %v551, %v97
  %555 = vst [vmem:[#allocation2 + $0x20] sm:$0xff] %v553
  %556 = vst [vmem:[#allocation2 + $0x28] sm:$0xff] %v554
  %557 = vrot.lane.b32.xlu0 %v525, 1
  %v558 = vpop.permute.xlu0 %557
  %559 = vrot.lane.b32.xlu0 %v526, 1
  %v560 = vpop.permute.xlu0 %559
  %v561 = vsel %vm108, %v558, %v560
  %v562 = vsel %vm108, %v560, %v558
  %v563 = vmul.f32 %v562, %v115
  %v564 = vmul.f32 %v561, %v119
  %565 = vst [vmem:[#allocation2 + $0x30] sm:$0xff] %v563
  %566 = vst [vmem:[#allocation2 + $0x38] sm:$0xff] %v564
  %567 = vst [vmem:[#allocation2 + $0x40] sm:$0xff] %v525
  %568 = vst [vmem:[#allocation2 + $0x48] sm:$0xff] %v526
  %569 = vrot.lane.b32.xlu0 %v525, 127
  %v570 = vpop.permute.xlu0 %569
  %571 = vrot.lane.b32.xlu0 %v526, 127
  %v572 = vpop.permute.xlu0 %571
  %v573 = vsel %vm132, %v570, %v572
  %v574 = vsel %vm132, %v572, %v570
  %v575 = vmul.f32 %v573, %v139
  %v576 = vmul.f32 %v574, %v143
  %577 = vst [vmem:[#allocation2 + $0x50] sm:$0xff] %v575
  %578 = vst [vmem:[#allocation2 + $0x58] sm:$0xff] %v576
  %579 = vrot.lane.b32.xlu0 %v525, 113
  %v580 = vpop.permute.xlu0 %579
  %581 = vrot.lane.b32.xlu0 %v526, 113
  %v582 = vpop.permute.xlu0 %581
  %v583 = vsel %vm154, %v580, %v582
  %v584 = vsel %vm154, %v582, %v580
  %v585 = vmul.f32 %v583, %v161
  %v586 = vmul.f32 %v584, %v165
  %587 = vst [vmem:[#allocation2 + $0x60] sm:$0xff] %v585
  %588 = vst [vmem:[#allocation2 + $0x68] sm:$0xff] %v586
  %589 = vrot.lane.b32.xlu0 %v525, 112
  %v590 = vpop.permute.xlu0 %589
  %591 = vrot.lane.b32.xlu0 %v526, 112
  %v592 = vpop.permute.xlu0 %591
  %v593 = vsel %vm176, %v590, %v592
  %v594 = vsel %vm176, %v592, %v590
  %v595 = vmul.f32 %v593, %v183
  %v596 = vmul.f32 %v594, %v187
  %597 = vst [vmem:[#allocation2 + $0x70] sm:$0xff] %v595
  %598 = vst [vmem:[#allocation2 + $0x78] sm:$0xff] %v596
  %599 = vrot.lane.b32.xlu0 %v525, 111
  %v600 = vpop.permute.xlu0 %599
  %601 = vrot.lane.b32.xlu0 %v526, 111
  %v602 = vpop.permute.xlu0 %601
  %v603 = vsel %vm198, %v600, %v602
  %v604 = vsel %vm198, %v602, %v600
  %v605 = vmul.f32 %v603, %v205
  %v606 = vmul.f32 %v604, %v209
  %607 = vst [vmem:[#allocation2 + $0x80] sm:$0xff] %v605
  %608 = vst [vmem:[#allocation2 + $0x88] sm:$0xff] %v606
  %v609 = vld [vmem:[#allocation2] sm:$0xff]
  %v610 = vld [vmem:[#allocation2 + $0x8] sm:$0xff]
  %v611 = vld [vmem:[#allocation2 + $0x10] sm:$0xff]
  %v612 = vld [vmem:[#allocation2 + $0x18] sm:$0xff]
  %v613 = vld [vmem:[#allocation2 + $0x20] sm:$0xff]
  %v614 = vld [vmem:[#allocation2 + $0x28] sm:$0xff]
  %v615 = vld [vmem:[#allocation2 + $0x30] sm:$0xff]
  %v616 = vld [vmem:[#allocation2 + $0x38] sm:$0xff]
  %v617 = vld [vmem:[#allocation2 + $0x40] sm:$0xff]
  %v618 = vld [vmem:[#allocation2 + $0x48] sm:$0xff]
  %v619 = vld [vmem:[#allocation2 + $0x50] sm:$0xff]
  %v620 = vld [vmem:[#allocation2 + $0x58] sm:$0xff]
  %v621 = vld [vmem:[#allocation2 + $0x60] sm:$0xff]
  %v622 = vld [vmem:[#allocation2 + $0x68] sm:$0xff]
  %v623 = vld [vmem:[#allocation2 + $0x70] sm:$0xff]
  %v624 = vld [vmem:[#allocation2 + $0x78] sm:$0xff]
  %v625 = vld [vmem:[#allocation2 + $0x80] sm:$0xff]
  %v626 = vld [vmem:[#allocation2 + $0x88] sm:$0xff]
  %627 = vmatprep.subr.mxu0 0.0
  %628 = vmatpush1.msra.mxu0 0.0
  %629 = vmatprep.subr.mxu0 0.0
  %630 = vmatpush1.msra.mxu0 0.0
  %631 = vmatprep.subr.mxu0 0.0
  %632 = vmatpush1.msra.mxu0 0.0
  %633 = vmatprep.subr.mxu0 0.0
  %634 = vmatpush1.msra.mxu0 0.0
  %635 = vmatprep.subr.mxu0 0.0
  %636 = vmatpush1.msra.mxu0 0.0
  %637 = vmatprep.subr.mxu0 0.0
  %638 = vmatpush1.msra.mxu0 0.0
  %639 = vmatprep.subr.mxu0 0.0
  %640 = vmatpush1.msra.mxu0 0.0
  %641 = vmatprep.subr.mxu0 %v626
  %642 = vmatpush1.msra.mxu0 %v625
  %643 = vmatprep.subr.mxu0 %v624
  %644 = vmatpush1.msra.mxu0 %v623
  %645 = vmatprep.subr.mxu0 %v622
  %646 = vmatpush1.msra.mxu0 %v621
  %647 = vmatprep.subr.mxu0 %v620
  %648 = vmatpush1.msra.mxu0 %v619
  %649 = vmatprep.subr.mxu0 %v618
  %650 = vmatpush1.msra.mxu0 %v617
  %651 = vmatprep.subr.mxu0 %v616
  %652 = vmatpush1.msra.mxu0 %v615
  %653 = vmatprep.subr.mxu0 %v614
  %654 = vmatpush1.msra.mxu0 %v613
  %655 = vmatprep.subr.mxu0 %v612
  %656 = vmatpush1.msra.mxu0 %v611
  %657 = vmatprep.subr.mxu0 %v610
  %658 = vmatpush1.msra.mxu0 %v609
  %659 = vmatprep.subr.mxu0 0.0
  %660 = vmatpush2.msra.mxu0 0.0
  %661 = vmatprep.subr.mxu0 0.0
  %662 = vmatpush2.msra.mxu0 0.0
  %663 = vmatprep.subr.mxu0 0.0
  %664 = vmatpush2.msra.mxu0 0.0
  %665 = vmatprep.subr.mxu0 0.0
  %666 = vmatpush2.msra.mxu0 0.0
  %667 = vmatprep.subr.mxu0 0.0
  %668 = vmatpush2.msra.mxu0 0.0
  %669 = vmatprep.subr.mxu0 0.0
  %670 = vmatpush2.msra.mxu0 0.0
  %671 = vmatprep.subr.mxu0 0.0
  %672 = vmatpush2.msra.mxu0 0.0
  %673 = vmatprep.subr.mxu0 0.0
  %674 = vmatpush2.msra.mxu0 0.0
  %675 = vmatprep.subr.mxu0 0.0
  %676 = vmatpush2.msra.mxu0 0.0
  %677 = vmatprep.subr.mxu0 0.0
  %678 = vmatpush2.msra.mxu0 0.0
  %679 = vmatprep.subr.mxu0 0.0
  %680 = vmatpush2.msra.mxu0 0.0
  %681 = vmatprep.subr.mxu0 0.0
  %682 = vmatpush2.msra.mxu0 0.0
  %683 = vmatprep.subr.mxu0 0.0
  %684 = vmatpush2.msra.mxu0 0.0
  %685 = vmatprep.subr.mxu0 0.0
  %686 = vmatpush2.msra.mxu0 0.0
  %687 = vmatprep.subr.mxu0 0.0
  %688 = vmatpush2.msra.mxu0 0.0
  %689 = vmatprep.subr.mxu0 0.0
  %690 = vmatpush2.msra.mxu0 0.0
  %691 = vmatprep.mubr.f32.mxu0 0.0
  %692 = vmatmul.mubr.f32.gmra.mxu0 %v236
  %v693 = vpop.f32.mrf.mxu0
  %v694 = vadd.f32 0.0, %v693
  %v695 = vpop.f32.mrf.mxu0
  %v696 = vadd.f32 0.0, %v695
  %697 = vdwg.mxu0
  %v698 = vadd.f32 %v694, %v696
  %699 = vadd.xlane.f32.xlu0 %v698
  %v700 = vpop.xlane.xlu0 %699
  %v701 = vmul.f32 %v700, %v312
  %v702 = vsub.f32 %v694, %v701
  %v703 = vsub.f32 %v696, %v701
  %v704 = vmul.f32 %v702, %v702
  %v705 = vmul.f32 %v703, %v703
  %v706 = vadd.f32 %v704, %v705
  %707 = vadd.xlane.f32.xlu0 %v706
  %v708 = vpop.xlane.xlu0 %707
  %v709 = vmul.f32 %v708, %v312
  %v710 = vadd.f32 %v709, 1e-05
  %v711 = vrsqrt.pop %v710
  %v712 = vmul.f32 %v702, %v711
  %v713 = vmul.f32 %v703, %v711
  %v714 = vmax.f32 %v712, 0.0
  %v715 = vmax.f32 %v713, 0.0
  %716 = vrot.lane.b32.xlu0 %v714, 17
  %v717 = vpop.permute.xlu0 %716
  %718 = vrot.lane.b32.xlu0 %v715, 17
  %v719 = vpop.permute.xlu0 %718
  %v720 = vsel %vm42, %v717, %v719
  %v721 = vsel %vm42, %v719, %v717
  %v722 = vmul.f32 %v721, %v49
  %v723 = vmul.f32 %v720, %v53
  %724 = vst [vmem:[#allocation2] sm:$0xff] %v722
  %725 = vst [vmem:[#allocation2 + $0x8] sm:$0xff] %v723
  %726 = vrot.lane.b32.xlu0 %v714, 16
  %v727 = vpop.permute.xlu0 %726
  %728 = vrot.lane.b32.xlu0 %v715, 16
  %v729 = vpop.permute.xlu0 %728
  %v730 = vsel %vm64, %v727, %v729
  %v731 = vsel %vm64, %v729, %v727
  %v732 = vmul.f32 %v731, %v71
  %v733 = vmul.f32 %v730, %v75
  %734 = vst [vmem:[#allocation2 + $0x10] sm:$0xff] %v732
  %735 = vst [vmem:[#allocation2 + $0x18] sm:$0xff] %v733
  %736 = vrot.lane.b32.xlu0 %v714, 15
  %v737 = vpop.permute.xlu0 %736
  %738 = vrot.lane.b32.xlu0 %v715, 15
  %v739 = vpop.permute.xlu0 %738
  %v740 = vsel %vm86, %v737, %v739
  %v741 = vsel %vm86, %v739, %v737
  %v742 = vmul.f32 %v741, %v93
  %v743 = vmul.f32 %v740, %v97
  %744 = vst [vmem:[#allocation2 + $0x20] sm:$0xff] %v742
  %745 = vst [vmem:[#allocation2 + $0x28] sm:$0xff] %v743
  %746 = vrot.lane.b32.xlu0 %v714, 1
  %v747 = vpop.permute.xlu0 %746
  %748 = vrot.lane.b32.xlu0 %v715, 1
  %v749 = vpop.permute.xlu0 %748
  %v750 = vsel %vm108, %v747, %v749
  %v751 = vsel %vm108, %v749, %v747
  %v752 = vmul.f32 %v751, %v115
  %v753 = vmul.f32 %v750, %v119
  %754 = vst [vmem:[#allocation2 + $0x30] sm:$0xff] %v752
  %755 = vst [vmem:[#allocation2 + $0x38] sm:$0xff] %v753
  %756 = vst [vmem:[#allocation2 + $0x40] sm:$0xff] %v714
  %757 = vst [vmem:[#allocation2 + $0x48] sm:$0xff] %v715
  %758 = vrot.lane.b32.xlu0 %v714, 127
  %v759 = vpop.permute.xlu0 %758
  %760 = vrot.lane.b32.xlu0 %v715, 127
  %v761 = vpop.permute.xlu0 %760
  %v762 = vsel %vm132, %v759, %v761
  %v763 = vsel %vm132, %v761, %v759
  %v764 = vmul.f32 %v762, %v139
  %v765 = vmul.f32 %v763, %v143
  %766 = vst [vmem:[#allocation2 + $0x50] sm:$0xff] %v764
  %767 = vst [vmem:[#allocation2 + $0x58] sm:$0xff] %v765
  %768 = vrot.lane.b32.xlu0 %v714, 113
  %v769 = vpop.permute.xlu0 %768
  %770 = vrot.lane.b32.xlu0 %v715, 113
  %v771 = vpop.permute.xlu0 %770
  %v772 = vsel %vm154, %v769, %v771
  %v773 = vsel %vm154, %v771, %v769
  %v774 = vmul.f32 %v772, %v161
  %v775 = vmul.f32 %v773, %v165
  %776 = vst [vmem:[#allocation2 + $0x60] sm:$0xff] %v774
  %777 = vst [vmem:[#allocation2 + $0x68] sm:$0xff] %v775
  %778 = vrot.lane.b32.xlu0 %v714, 112
  %v779 = vpop.permute.xlu0 %778
  %780 = vrot.lane.b32.xlu0 %v715, 112
  %v781 = vpop.permute.xlu0 %780
  %v782 = vsel %vm176, %v779, %v781
  %v783 = vsel %vm176, %v781, %v779
  %v784 = vmul.f32 %v782, %v183
  %v785 = vmul.f32 %v783, %v187
  %786 = vst [vmem:[#allocation2 + $0x70] sm:$0xff] %v784
  %787 = vst [vmem:[#allocation2 + $0x78] sm:$0xff] %v785
  %788 = vrot.lane.b32.xlu0 %v714, 111
  %v789 = vpop.permute.xlu0 %788
  %790 = vrot.lane.b32.xlu0 %v715, 111
  %v791 = vpop.permute.xlu0 %790
  %v792 = vsel %vm198, %v789, %v791
  %v793 = vsel %vm198, %v791, %v789
  %v794 = vmul.f32 %v792, %v205
  %v795 = vmul.f32 %v793, %v209
  %796 = vst [vmem:[#allocation2 + $0x80] sm:$0xff] %v794
  %797 = vst [vmem:[#allocation2 + $0x88] sm:$0xff] %v795
  %v798 = vld [vmem:[#allocation2] sm:$0xff]
  %v799 = vld [vmem:[#allocation2 + $0x8] sm:$0xff]
  %v800 = vld [vmem:[#allocation2 + $0x10] sm:$0xff]
  %v801 = vld [vmem:[#allocation2 + $0x18] sm:$0xff]
  %v802 = vld [vmem:[#allocation2 + $0x20] sm:$0xff]
  %v803 = vld [vmem:[#allocation2 + $0x28] sm:$0xff]
  %v804 = vld [vmem:[#allocation2 + $0x30] sm:$0xff]
  %v805 = vld [vmem:[#allocation2 + $0x38] sm:$0xff]
  %v806 = vld [vmem:[#allocation2 + $0x40] sm:$0xff]
  %v807 = vld [vmem:[#allocation2 + $0x48] sm:$0xff]
  %v808 = vld [vmem:[#allocation2 + $0x50] sm:$0xff]
  %v809 = vld [vmem:[#allocation2 + $0x58] sm:$0xff]
  %v810 = vld [vmem:[#allocation2 + $0x60] sm:$0xff]
  %v811 = vld [vmem:[#allocation2 + $0x68] sm:$0xff]
  %v812 = vld [vmem:[#allocation2 + $0x70] sm:$0xff]
  %v813 = vld [vmem:[#allocation2 + $0x78] sm:$0xff]
  %v814 = vld [vmem:[#allocation2 + $0x80] sm:$0xff]
  %v815 = vld [vmem:[#allocation2 + $0x88] sm:$0xff]
  %816 = vmatprep.subr.mxu0 0.0
  %817 = vmatpush1.msra.mxu0 0.0
  %818 = vmatprep.subr.mxu0 0.0
  %819 = vmatpush1.msra.mxu0 0.0
  %820 = vmatprep.subr.mxu0 0.0
  %821 = vmatpush1.msra.mxu0 0.0
  %822 = vmatprep.subr.mxu0 0.0
  %823 = vmatpush1.msra.mxu0 0.0
  %824 = vmatprep.subr.mxu0 0.0
  %825 = vmatpush1.msra.mxu0 0.0
  %826 = vmatprep.subr.mxu0 0.0
  %827 = vmatpush1.msra.mxu0 0.0
  %828 = vmatprep.subr.mxu0 0.0
  %829 = vmatpush1.msra.mxu0 0.0
  %830 = vmatprep.subr.mxu0 %v815
  %831 = vmatpush1.msra.mxu0 %v814
  %832 = vmatprep.subr.mxu0 %v813
  %833 = vmatpush1.msra.mxu0 %v812
  %834 = vmatprep.subr.mxu0 %v811
  %835 = vmatpush1.msra.mxu0 %v810
  %836 = vmatprep.subr.mxu0 %v809
  %837 = vmatpush1.msra.mxu0 %v808
  %838 = vmatprep.subr.mxu0 %v807
  %839 = vmatpush1.msra.mxu0 %v806
  %840 = vmatprep.subr.mxu0 %v805
  %841 = vmatpush1.msra.mxu0 %v804
  %842 = vmatprep.subr.mxu0 %v803
  %843 = vmatpush1.msra.mxu0 %v802
  %844 = vmatprep.subr.mxu0 %v801
  %845 = vmatpush1.msra.mxu0 %v800
  %846 = vmatprep.subr.mxu0 %v799
  %847 = vmatpush1.msra.mxu0 %v798
  %848 = vmatprep.subr.mxu0 0.0
  %849 = vmatpush2.msra.mxu0 0.0
  %850 = vmatprep.subr.mxu0 0.0
  %851 = vmatpush2.msra.mxu0 0.0
  %852 = vmatprep.subr.mxu0 0.0
  %853 = vmatpush2.msra.mxu0 0.0
  %854 = vmatprep.subr.mxu0 0.0
  %855 = vmatpush2.msra.mxu0 0.0
  %856 = vmatprep.subr.mxu0 0.0
  %857 = vmatpush2.msra.mxu0 0.0
  %858 = vmatprep.subr.mxu0 0.0
  %859 = vmatpush2.msra.mxu0 0.0
  %860 = vmatprep.subr.mxu0 0.0
  %861 = vmatpush2.msra.mxu0 0.0
  %862 = vmatprep.subr.mxu0 0.0
  %863 = vmatpush2.msra.mxu0 0.0
  %864 = vmatprep.subr.mxu0 0.0
  %865 = vmatpush2.msra.mxu0 0.0
  %866 = vmatprep.subr.mxu0 0.0
  %867 = vmatpush2.msra.mxu0 0.0
  %868 = vmatprep.subr.mxu0 0.0
  %869 = vmatpush2.msra.mxu0 0.0
  %870 = vmatprep.subr.mxu0 0.0
  %871 = vmatpush2.msra.mxu0 0.0
  %872 = vmatprep.subr.mxu0 0.0
  %873 = vmatpush2.msra.mxu0 0.0
  %874 = vmatprep.subr.mxu0 0.0
  %875 = vmatpush2.msra.mxu0 0.0
  %876 = vmatprep.subr.mxu0 0.0
  %877 = vmatpush2.msra.mxu0 0.0
  %878 = vmatprep.subr.mxu0 0.0
  %879 = vmatpush2.msra.mxu0 0.0
  %880 = vmatprep.mubr.f32.mxu0 0.0
  %881 = vmatmul.mubr.f32.gmra.mxu0 %v429
  %v882 = vpop.f32.mrf.mxu0
  %v883 = vadd.f32 0.0, %v882
  %v884 = vpop.f32.mrf.mxu0
  %v885 = vadd.f32 0.0, %v884
  %886 = vdwg.mxu0
  %v887 = vadd.f32 %v883, %v885
  %888 = vadd.xlane.f32.xlu0 %v887
  %v889 = vpop.xlane.xlu0 %888
  %v890 = vmul.f32 %v889, %v312
  %v891 = vsub.f32 %v883, %v890
  %v892 = vsub.f32 %v885, %v890
  %v893 = vmul.f32 %v891, %v891
  %v894 = vmul.f32 %v892, %v892
  %v895 = vadd.f32 %v893, %v894
  %896 = vadd.xlane.f32.xlu0 %v895
  %v897 = vpop.xlane.xlu0 %896
  %v898 = vmul.f32 %v897, %v312
  %v899 = vadd.f32 %v898, 1e-05
  %v900 = vrsqrt.pop %v899
  %v901 = vmul.f32 %v891, %v900
  %v902 = vmul.f32 %v892, %v900
  %v903 = vmul.f32 %v901, 0.1
  %v904 = vmul.f32 %v902, 0.1
  %v905 = vadd.f32 %v525, %v903
  %v906 = vadd.f32 %v526, %v904
  %s907 = scalar_lea.vmem %s4, 16
  %908 = vst [vmem:[%s907] sm:$0xff] %v905
  %909 = vst [vmem:[%s907 + $0x8] sm:$0xff] %v906
  // Predicated region
  $region18: #{resblock_forward.1} parent=0 // pred_check
    _
  $region19: #{resblock_forward.1} parent=0 // pred_check_branch
    %911 = sbr.rel (0) target = $region21
  $region20: #{resblock_forward.1} parent=0 // pred_region
    _
  $region21: #{resblock_forward.1} parent=0 // pred_fallthru
    _
  // Predicated region
  $region22: #{resblock_forward.1} parent=0 // pred_check
    _
  $region23: #{resblock_forward.1} parent=0 // pred_check_branch
    %913 = sbr.rel (0) target = $region25
  $region24: #{resblock_forward.1} parent=0 // pred_region
    _
  $region25: #{resblock_forward.1} parent=0 // pred_fallthru
    _

</llo_original>
